<compile_context>
chip_gen: v7x
topology: tpu7x:2x2x1
jax: 0.10.0
libtpu: 0.0.40
codegen_flags: <defaults>
</compile_context>

<pallas_src>
import functools

import jax
import jax.numpy as jnp
from jax.experimental import pallas as pl
from jax.experimental.pallas import tpu as pltpu

LAYER_DIMS = [(5, 512), (512, 256), (256, 128), (128, 64), (64, 32), (32, 2)]
N_HIDDEN = 5              # first 5 layers have (folded) BatchNorm + LeakyReLU
LEAKY_SLOPE = 0.1
BN_EPS = 1e-5

IN_FEATURES = LAYER_DIMS[0][0]      # 5
PADDED_IN = 8                       # pad input features 5 -> 8 (sublane granule)
N_OUT = LAYER_DIMS[-1][1]           # 2
LANE = 128                          # pad narrow layer widths to full lanes


def _cdiv(a, b):
    return (a + b - 1) // b


def _round_up(n, m):
    return _cdiv(n, m) * m


def _padded_layer_dims():
    """(in, out) per layer after zero-row/column padding to lane-dense widths."""
    dims = []
    prev_out = PADDED_IN
    for _, fout in LAYER_DIMS:
        pout = _round_up(fout, LANE)
        dims.append((prev_out, pout))
        prev_out = pout
    return dims


# --------------------------------------------------------------------------
# Kernel
# --------------------------------------------------------------------------
def mlp_kernel(x_ref, *refs):
    """Fused 6-layer MLP forward for one batch tile.

    refs layout: (w1, b1, w2, b2, ..., w6, b6, out_ref).
    Weights bf16 (BN folded in), biases f32, f32 MXU accumulation.
    """
    out_ref = refs[-1]
    params = refs[:-1]
    n_layers = len(params) // 2

    h = x_ref[...]                                  # bf16 (tm, 8)
    for li in range(n_layers):
        w = params[2 * li]
        b = params[2 * li + 1]
        y = jnp.dot(h, w[...], preferred_element_type=jnp.float32) + b[...]
        if li < n_layers - 1:
            # LeakyReLU(0.1): max(y, 0.1*y) == where(y>=0, y, 0.1*y) for slope in (0,1)
            y = jnp.maximum(y, LEAKY_SLOPE * y)
            h = y.astype(jnp.bfloat16)
        else:
            out_ref[...] = y.astype(out_ref.dtype)


# --------------------------------------------------------------------------
# Parameters (deterministic, mirroring the PyTorch module at init)
# --------------------------------------------------------------------------
def init_params(key):
    """Build folded, padded, bf16 parameters.

    Linear: kaiming_normal_(fan_in, leaky_relu) -> std = sqrt(2)/sqrt(fan_in),
            bias = 0.01.
    BatchNorm1d (eval, at-init stats): gamma=1, beta=0, mean=0, var=1
            -> scale = 1/sqrt(1+eps), shift = 0, folded as
               W' = W * scale (per output column),  b' = b * scale + shift.
    Padding: zero rows/columns only; padded channels carry exact zeros through
    the whole network, so numerics of the real channels are untouched.
    NOTE: with trained running stats / gamma / beta, recompute the fold from
    those values — the kernel itself needs no change.
    """
    padded = _padded_layer_dims()
    params = []
    for i, ((fin, fout), (pin, pout)) in enumerate(zip(LAYER_DIMS, padded)):
        key, wk = jax.random.split(key)
        std = jnp.sqrt(2.0) / jnp.sqrt(float(fin))
        w = jax.random.normal(wk, (fin, fout), dtype=jnp.float32) * std
        b = jnp.full((fout,), 0.01, dtype=jnp.float32)

        if i < N_HIDDEN:
            gamma = jnp.ones((fout,), jnp.float32)
            beta = jnp.zeros((fout,), jnp.float32)
            mean = jnp.zeros((fout,), jnp.float32)
            var = jnp.ones((fout,), jnp.float32)
            scale = gamma / jnp.sqrt(var + BN_EPS)
            shift = beta - mean * scale
            w = w * scale[None, :]
            b = b * scale + shift

        w_pad = jnp.zeros((pin, pout), jnp.float32).at[:fin, :fout].set(w)
        b_pad = jnp.zeros((pout,), jnp.float32).at[:fout].set(b)

        params.append(w_pad.astype(jnp.bfloat16))
        params.append(b_pad.reshape(1, -1).astype(jnp.float32))
    return params


# --------------------------------------------------------------------------
# Wrapper
# --------------------------------------------------------------------------
def _select_tiling(batch, tm):
    """Balanced batch tiles; >=2 grid steps (batch>8) so v7x megacore gets work."""
    n_tiles = max(_cdiv(batch, tm), 1)
    if n_tiles == 1 and batch > 8:
        n_tiles = 2
    tm_eff = max(8, _round_up(_cdiv(batch, n_tiles), 8))
    padded_batch = n_tiles * tm_eff
    return tm_eff, padded_batch


@functools.partial(jax.jit, static_argnames=("tm",))
def landing_predictor_forward(x, params, tm=1024):
    """x: (batch, 5) f32 -> (batch, 2) f32."""
    params = list(params)
    batch, feat = x.shape

    tm_eff, padded_batch = _select_tiling(batch, tm)

    # Pad batch + features once, cast to bf16 once (halves x-tile DMA bytes).
    x_p = jnp.pad(
        x.astype(jnp.float32),
        ((0, padded_batch - batch), (0, PADDED_IN - feat)),
    ).astype(jnp.bfloat16)

    grid = (padded_batch // tm_eff,)

    in_specs = [pl.BlockSpec((tm_eff, PADDED_IN), lambda i: (i, 0))]
    for p in params:
        r, c = p.shape
        # Constant index_map -> weights/biases stay resident in VMEM across steps.
        in_specs.append(pl.BlockSpec((r, c), lambda i: (0, 0)))

    out_dim = params[-2].shape[1]   # padded output width (128, lane-dense store)
    out_spec = pl.BlockSpec((tm_eff, out_dim), lambda i: (i, 0))

    out = pl.pallas_call(
        mlp_kernel,
        out_shape=jax.ShapeDtypeStruct((padded_batch, out_dim), jnp.float32),
        grid_spec=pltpu.PrefetchScalarGridSpec(
            num_scalar_prefetch=0,
            grid=grid,
            in_specs=in_specs,
            out_specs=out_spec,
        ),
        compiler_params=pltpu.CompilerParams(
            dimension_semantics=("parallel",),
            vmem_limit_bytes=48 * 1024 * 1024,  # safe on v5e/v6e/v7x, ample headroom
        ),
    )(x_p, *params)

    return out[:batch, :N_OUT]


# --------------------------------------------------------------------------
# Plain-JAX reference with the IDENTICAL numeric path (bf16 operands,
# jnp.dot with f32 accumulation, folded BN, same padding).
# --------------------------------------------------------------------------
def reference_forward(x, params):
    batch, feat = x.shape
    xp = jnp.pad(x.astype(jnp.float32), ((0, 0), (0, PADDED_IN - feat)))
    h = xp.astype(jnp.bfloat16)
    n_layers = len(params) // 2
    for li in range(n_layers):
        w = params[2 * li]
        b = params[2 * li + 1]
        y = jnp.dot(h, w, preferred_element_type=jnp.float32) + b
        if li < n_layers - 1:
            y = jnp.maximum(y, LEAKY_SLOPE * y)
            h = y.astype(jnp.bfloat16)
        else:
            return y[:, :N_OUT]


if __name__ == "__main__":
    key = jax.random.PRNGKey(0)
    pkey, xkey = jax.random.split(key)

    params = init_params(pkey)

    # Batch of 5-feature inputs (matches nn.Linear(5, 512)); non-multiple of 8
    # to exercise batch padding and the balanced 2-step grid (2 x 152 rows).
    batch = 300
    x = jax.random.normal(xkey, (batch, IN_FEATURES), dtype=jnp.float32)

    out = landing_predictor_forward(x, params)
    out = jax.block_until_ready(out)

    ref = reference_forward(x, params)
    assert out.shape == (batch, N_OUT), out.shape
    max_diff = float(jnp.max(jnp.abs(out - ref)))
    # Tolerance accommodates MXU-vs-XLA accumulation-order differences of the
    # (identical) bf16/f32 compute path; typical observed diff is << 1e-2.
    assert jnp.allclose(out, ref, atol=2e-2, rtol=2e-2), (
        "mismatch vs reference: max abs diff = %g" % max_diff
    )

    print("KERNEL_OK")
</pallas_src>

<mosaic_0001>
module attributes {stable_mosaic.version = 11 : i64} {
  func.func @mlp_kernel(%arg0: i32, %arg1: memref<152x8xbf16, #tpu.memory_space<vmem>>, %arg2: memref<8x512xbf16, #tpu.memory_space<vmem>>, %arg3: memref<1x512xf32, #tpu.memory_space<vmem>>, %arg4: memref<512x256xbf16, #tpu.memory_space<vmem>>, %arg5: memref<1x256xf32, #tpu.memory_space<vmem>>, %arg6: memref<256x128xbf16, #tpu.memory_space<vmem>>, %arg7: memref<1x128xf32, #tpu.memory_space<vmem>>, %arg8: memref<128x128xbf16, #tpu.memory_space<vmem>>, %arg9: memref<1x128xf32, #tpu.memory_space<vmem>>, %arg10: memref<128x128xbf16, #tpu.memory_space<vmem>>, %arg11: memref<1x128xf32, #tpu.memory_space<vmem>>, %arg12: memref<128x128xbf16, #tpu.memory_space<vmem>>, %arg13: memref<1x128xf32, #tpu.memory_space<vmem>>, %arg14: memref<152x128xf32, #tpu.memory_space<vmem>>) attributes {dimension_semantics = [#tpu.dimension_semantics<parallel>], iteration_bounds = array<i64: 2>, scalar_prefetch = 0 : i64, scratch_operands = 0 : i64, tpu.core_type = #tpu.core_type<tc>, window_params = [{transform_indices = @transform_0, window_bounds = array<i64: 152, 8>}, {pipeline_mode = #tpu.pipeline_mode<synchronous>, transform_indices = @transform_1, window_bounds = array<i64: 8, 512>}, {pipeline_mode = #tpu.pipeline_mode<synchronous>, transform_indices = @transform_2, window_bounds = array<i64: 1, 512>}, {pipeline_mode = #tpu.pipeline_mode<synchronous>, transform_indices = @transform_3, window_bounds = array<i64: 512, 256>}, {pipeline_mode = #tpu.pipeline_mode<synchronous>, transform_indices = @transform_4, window_bounds = array<i64: 1, 256>}, {pipeline_mode = #tpu.pipeline_mode<synchronous>, transform_indices = @transform_5, window_bounds = array<i64: 256, 128>}, {pipeline_mode = #tpu.pipeline_mode<synchronous>, transform_indices = @transform_6, window_bounds = array<i64: 1, 128>}, {pipeline_mode = #tpu.pipeline_mode<synchronous>, transform_indices = @transform_7, window_bounds = array<i64: 128, 128>}, {pipeline_mode = #tpu.pipeline_mode<synchronous>, transform_indices = @transform_8, window_bounds = array<i64: 1, 128>}, {pipeline_mode = #tpu.pipeline_mode<synchronous>, transform_indices = @transform_9, window_bounds = array<i64: 128, 128>}, {pipeline_mode = #tpu.pipeline_mode<synchronous>, transform_indices = @transform_10, window_bounds = array<i64: 1, 128>}, {pipeline_mode = #tpu.pipeline_mode<synchronous>, transform_indices = @transform_11, window_bounds = array<i64: 128, 128>}, {pipeline_mode = #tpu.pipeline_mode<synchronous>, transform_indices = @transform_12, window_bounds = array<i64: 1, 128>}, {transform_indices = @transform_13, window_bounds = array<i64: 152, 128>}]} {
    %c0 = arith.constant 0 : index
    %c0_0 = arith.constant 0 : index
    %0 = vector.load %arg1[%c0, %c0_0] : memref<152x8xbf16, #tpu.memory_space<vmem>>, vector<152x8xbf16>
    %c0_1 = arith.constant 0 : index
    %c0_2 = arith.constant 0 : index
    %1 = vector.load %arg2[%c0_1, %c0_2] : memref<8x512xbf16, #tpu.memory_space<vmem>>, vector<8x512xbf16>
    %cst = arith.constant dense<0.000000e+00> : vector<152x512xf32>
    %2 = tpu.matmul %0, %1, %cst {dimension_numbers = #tpu.dot_dimension_numbers<[1], [0], [0], [1], [0, 0, 1, 1], [], []>} : vector<152x8xbf16>, vector<8x512xbf16>, vector<152x512xf32> -> vector<152x512xf32>
    %c0_3 = arith.constant 0 : index
    %c0_4 = arith.constant 0 : index
    %3 = vector.load %arg3[%c0_3, %c0_4] : memref<1x512xf32, #tpu.memory_space<vmem>>, vector<1x512xf32>
    %4 = vector.broadcast %3 : vector<1x512xf32> to vector<152x512xf32>
    %5 = arith.addf %2, %4 : vector<152x512xf32>
    %cst_5 = arith.constant 1.000000e-01 : f32
    %6 = vector.broadcast %cst_5 : f32 to vector<152x512xf32>
    %7 = arith.mulf %6, %5 : vector<152x512xf32>
    %8 = arith.maximumf %5, %7 : vector<152x512xf32>
    %9 = arith.truncf %8 : vector<152x512xf32> to vector<152x512xbf16>
    %c0_6 = arith.constant 0 : index
    %c0_7 = arith.constant 0 : index
    %10 = vector.load %arg4[%c0_6, %c0_7] : memref<512x256xbf16, #tpu.memory_space<vmem>>, vector<512x256xbf16>
    %cst_8 = arith.constant dense<0.000000e+00> : vector<152x256xf32>
    %11 = tpu.matmul %9, %10, %cst_8 {dimension_numbers = #tpu.dot_dimension_numbers<[1], [0], [0], [1], [0, 0, 1, 1], [], []>} : vector<152x512xbf16>, vector<512x256xbf16>, vector<152x256xf32> -> vector<152x256xf32>
    %c0_9 = arith.constant 0 : index
    %c0_10 = arith.constant 0 : index
    %12 = vector.load %arg5[%c0_9, %c0_10] : memref<1x256xf32, #tpu.memory_space<vmem>>, vector<1x256xf32>
    %13 = vector.broadcast %12 : vector<1x256xf32> to vector<152x256xf32>
    %14 = arith.addf %11, %13 : vector<152x256xf32>
    %cst_11 = arith.constant 1.000000e-01 : f32
    %15 = vector.broadcast %cst_11 : f32 to vector<152x256xf32>
    %16 = arith.mulf %15, %14 : vector<152x256xf32>
    %17 = arith.maximumf %14, %16 : vector<152x256xf32>
    %18 = arith.truncf %17 : vector<152x256xf32> to vector<152x256xbf16>
    %c0_12 = arith.constant 0 : index
    %c0_13 = arith.constant 0 : index
    %19 = vector.load %arg6[%c0_12, %c0_13] : memref<256x128xbf16, #tpu.memory_space<vmem>>, vector<256x128xbf16>
    %cst_14 = arith.constant dense<0.000000e+00> : vector<152x128xf32>
    %20 = tpu.matmul %18, %19, %cst_14 {dimension_numbers = #tpu.dot_dimension_numbers<[1], [0], [0], [1], [0, 0, 1, 1], [], []>} : vector<152x256xbf16>, vector<256x128xbf16>, vector<152x128xf32> -> vector<152x128xf32>
    %c0_15 = arith.constant 0 : index
    %c0_16 = arith.constant 0 : index
    %21 = vector.load %arg7[%c0_15, %c0_16] : memref<1x128xf32, #tpu.memory_space<vmem>>, vector<1x128xf32>
    %22 = vector.broadcast %21 : vector<1x128xf32> to vector<152x128xf32>
    %23 = arith.addf %20, %22 : vector<152x128xf32>
    %cst_17 = arith.constant 1.000000e-01 : f32
    %24 = vector.broadcast %cst_17 : f32 to vector<152x128xf32>
    %25 = arith.mulf %24, %23 : vector<152x128xf32>
    %26 = arith.maximumf %23, %25 : vector<152x128xf32>
    %27 = arith.truncf %26 : vector<152x128xf32> to vector<152x128xbf16>
    %c0_18 = arith.constant 0 : index
    %c0_19 = arith.constant 0 : index
    %28 = vector.load %arg8[%c0_18, %c0_19] : memref<128x128xbf16, #tpu.memory_space<vmem>>, vector<128x128xbf16>
    %cst_20 = arith.constant dense<0.000000e+00> : vector<152x128xf32>
    %29 = tpu.matmul %27, %28, %cst_20 {dimension_numbers = #tpu.dot_dimension_numbers<[1], [0], [0], [1], [0, 0, 1, 1], [], []>} : vector<152x128xbf16>, vector<128x128xbf16>, vector<152x128xf32> -> vector<152x128xf32>
    %c0_21 = arith.constant 0 : index
    %c0_22 = arith.constant 0 : index
    %30 = vector.load %arg9[%c0_21, %c0_22] : memref<1x128xf32, #tpu.memory_space<vmem>>, vector<1x128xf32>
    %31 = vector.broadcast %30 : vector<1x128xf32> to vector<152x128xf32>
    %32 = arith.addf %29, %31 : vector<152x128xf32>
    %cst_23 = arith.constant 1.000000e-01 : f32
    %33 = vector.broadcast %cst_23 : f32 to vector<152x128xf32>
    %34 = arith.mulf %33, %32 : vector<152x128xf32>
    %35 = arith.maximumf %32, %34 : vector<152x128xf32>
    %36 = arith.truncf %35 : vector<152x128xf32> to vector<152x128xbf16>
    %c0_24 = arith.constant 0 : index
    %c0_25 = arith.constant 0 : index
    %37 = vector.load %arg10[%c0_24, %c0_25] : memref<128x128xbf16, #tpu.memory_space<vmem>>, vector<128x128xbf16>
    %cst_26 = arith.constant dense<0.000000e+00> : vector<152x128xf32>
    %38 = tpu.matmul %36, %37, %cst_26 {dimension_numbers = #tpu.dot_dimension_numbers<[1], [0], [0], [1], [0, 0, 1, 1], [], []>} : vector<152x128xbf16>, vector<128x128xbf16>, vector<152x128xf32> -> vector<152x128xf32>
    %c0_27 = arith.constant 0 : index
    %c0_28 = arith.constant 0 : index
    %39 = vector.load %arg11[%c0_27, %c0_28] : memref<1x128xf32, #tpu.memory_space<vmem>>, vector<1x128xf32>
    %40 = vector.broadcast %39 : vector<1x128xf32> to vector<152x128xf32>
    %41 = arith.addf %38, %40 : vector<152x128xf32>
    %cst_29 = arith.constant 1.000000e-01 : f32
    %42 = vector.broadcast %cst_29 : f32 to vector<152x128xf32>
    %43 = arith.mulf %42, %41 : vector<152x128xf32>
    %44 = arith.maximumf %41, %43 : vector<152x128xf32>
    %45 = arith.truncf %44 : vector<152x128xf32> to vector<152x128xbf16>
    %c0_30 = arith.constant 0 : index
    %c0_31 = arith.constant 0 : index
    %46 = vector.load %arg12[%c0_30, %c0_31] : memref<128x128xbf16, #tpu.memory_space<vmem>>, vector<128x128xbf16>
    %cst_32 = arith.constant dense<0.000000e+00> : vector<152x128xf32>
    %47 = tpu.matmul %45, %46, %cst_32 {dimension_numbers = #tpu.dot_dimension_numbers<[1], [0], [0], [1], [0, 0, 1, 1], [], []>} : vector<152x128xbf16>, vector<128x128xbf16>, vector<152x128xf32> -> vector<152x128xf32>
    %c0_33 = arith.constant 0 : index
    %c0_34 = arith.constant 0 : index
    %48 = vector.load %arg13[%c0_33, %c0_34] : memref<1x128xf32, #tpu.memory_space<vmem>>, vector<1x128xf32>
    %49 = vector.broadcast %48 : vector<1x128xf32> to vector<152x128xf32>
    %50 = arith.addf %47, %49 : vector<152x128xf32>
    %c0_35 = arith.constant 0 : index
    %c0_36 = arith.constant 0 : index
    %51 = vector.load %arg14[%c0_35, %c0_36] : memref<152x128xf32, #tpu.memory_space<vmem>>, vector<152x128xf32>
    tpu.vector_store %arg14[%c0_35, %c0_36], %50 {strides = array<i32>} : memref<152x128xf32, #tpu.memory_space<vmem>>, vector<152x128xf32>,
    return
  }
  func.func @transform_0(%arg0: i32) -> (i32, i32) {
    %c0_i32 = arith.constant 0 : i32
    %c0_i32_0 = arith.constant 0 : i32
    return %arg0, %c0_i32 : i32, i32
  }
  func.func @transform_1(%arg0: i32) -> (i32, i32) {
    %c0_i32 = arith.constant 0 : i32
    %c0_i32_0 = arith.constant 0 : i32
    %c0_i32_1 = arith.constant 0 : i32
    return %c0_i32, %c0_i32_0 : i32, i32
  }
  func.func @transform_2(%arg0: i32) -> (i32, i32) {
    %c0_i32 = arith.constant 0 : i32
    %c0_i32_0 = arith.constant 0 : i32
    %c0_i32_1 = arith.constant 0 : i32
    return %c0_i32, %c0_i32_0 : i32, i32
  }
  func.func @transform_3(%arg0: i32) -> (i32, i32) {
    %c0_i32 = arith.constant 0 : i32
    %c0_i32_0 = arith.constant 0 : i32
    %c0_i32_1 = arith.constant 0 : i32
    return %c0_i32, %c0_i32_0 : i32, i32
  }
  func.func @transform_4(%arg0: i32) -> (i32, i32) {
    %c0_i32 = arith.constant 0 : i32
    %c0_i32_0 = arith.constant 0 : i32
    %c0_i32_1 = arith.constant 0 : i32
    return %c0_i32, %c0_i32_0 : i32, i32
  }
  func.func @transform_5(%arg0: i32) -> (i32, i32) {
    %c0_i32 = arith.constant 0 : i32
    %c0_i32_0 = arith.constant 0 : i32
    %c0_i32_1 = arith.constant 0 : i32
    return %c0_i32, %c0_i32_0 : i32, i32
  }
  func.func @transform_6(%arg0: i32) -> (i32, i32) {
    %c0_i32 = arith.constant 0 : i32
    %c0_i32_0 = arith.constant 0 : i32
    %c0_i32_1 = arith.constant 0 : i32
    return %c0_i32, %c0_i32_0 : i32, i32
  }
  func.func @transform_7(%arg0: i32) -> (i32, i32) {
    %c0_i32 = arith.constant 0 : i32
    %c0_i32_0 = arith.constant 0 : i32
    %c0_i32_1 = arith.constant 0 : i32
    return %c0_i32, %c0_i32_0 : i32, i32
  }
  func.func @transform_8(%arg0: i32) -> (i32, i32) {
    %c0_i32 = arith.constant 0 : i32
    %c0_i32_0 = arith.constant 0 : i32
    %c0_i32_1 = arith.constant 0 : i32
    return %c0_i32, %c0_i32_0 : i32, i32
  }
  func.func @transform_9(%arg0: i32) -> (i32, i32) {
    %c0_i32 = arith.constant 0 : i32
    %c0_i32_0 = arith.constant 0 : i32
    %c0_i32_1 = arith.constant 0 : i32
    return %c0_i32, %c0_i32_0 : i32, i32
  }
  func.func @transform_10(%arg0: i32) -> (i32, i32) {
    %c0_i32 = arith.constant 0 : i32
    %c0_i32_0 = arith.constant 0 : i32
    %c0_i32_1 = arith.constant 0 : i32
    return %c0_i32, %c0_i32_0 : i32, i32
  }
  func.func @transform_11(%arg0: i32) -> (i32, i32) {
    %c0_i32 = arith.constant 0 : i32
    %c0_i32_0 = arith.constant 0 : i32
    %c0_i32_1 = arith.constant 0 : i32
    return %c0_i32, %c0_i32_0 : i32, i32
  }
  func.func @transform_12(%arg0: i32) -> (i32, i32) {
    %c0_i32 = arith.constant 0 : i32
    %c0_i32_0 = arith.constant 0 : i32
    %c0_i32_1 = arith.constant 0 : i32
    return %c0_i32, %c0_i32_0 : i32, i32
  }
  func.func @transform_13(%arg0: i32) -> (i32, i32) {
    %c0_i32 = arith.constant 0 : i32
    %c0_i32_0 = arith.constant 0 : i32
    return %arg0, %c0_i32 : i32, i32
  }
}

</mosaic_0001>

<llo_original>
// kernel: landing_predictor_forward.1
$region0: #{landing_predictor_forward.1}
  #allocation0 [shape = 'u32[]', space=smem, size = 0x4, offset = 0x4, fixed_abs, tag = 'smem constant byte address 0x4 - core index']
  #allocation1 [shape = 'u32[144,128]{1,0:T(1,128)}', space=vmem, size = 0x12000, scoped, tag = 'internal scratch']
  %s0 = inlined_call_operand.vmem [shape: bf16[304,8], index: 0, kind: input, shape index: {}]
  %s1 = inlined_call_operand.hbm [shape: bf16[8,512], index: 1, kind: input, shape index: {}]
  %s2 = inlined_call_operand.vmem [shape: f32[1,512], index: 2, kind: input, shape index: {}]
  %s3 = inlined_call_operand.vmem [shape: bf16[512,256], index: 3, kind: input, shape index: {}]
  %s4 = inlined_call_operand.vmem [shape: f32[1,256], index: 4, kind: input, shape index: {}]
  %s5 = inlined_call_operand.hbm [shape: bf16[256,128], index: 5, kind: input, shape index: {}]
  %s6 = inlined_call_operand.vmem [shape: f32[1,128], index: 6, kind: input, shape index: {}]
  %s7 = inlined_call_operand.hbm [shape: bf16[128,128], index: 7, kind: input, shape index: {}]
  %s8 = inlined_call_operand.vmem [shape: f32[1,128], index: 8, kind: input, shape index: {}]
  %s9 = inlined_call_operand.hbm [shape: bf16[128,128], index: 9, kind: input, shape index: {}]
  %s10 = inlined_call_operand.vmem [shape: f32[1,128], index: 10, kind: input, shape index: {}]
  %s11 = inlined_call_operand.hbm [shape: bf16[128,128], index: 11, kind: input, shape index: {}]
  %s12 = inlined_call_operand.vmem [shape: f32[1,128], index: 12, kind: input, shape index: {}]
  %s13 = inlined_call_operand.vmem [shape: f32[304,128], index: 13, kind: output, shape index: {}]
  %s14 = sld [smem:[#allocation0]]
  $region105: #{landing_predictor_forward.1} parent=0
    _
  %s16 = ssub.s32 1, %s14
  %s17 = scalar_select 0, %s16, %s14
  $region1: #{landing_predictor_forward.1} parent=0
    #allocation2 [shape = 'u8[8192]{0}', space=vmem, size = 0x2000, scoped, tag = 'input window, operand 1, single buffered']
    #allocation3 [shape = 's32[2]{0}', space=sflag, size = 0x8, scoped, tag = 'scoped memory for landing_predictor_forward.1']
    #allocation4 [shape = 'u8[65536]{0}', space=vmem, size = 0x10000, scoped, tag = 'input window, operand 5, single buffered']
    #allocation5 [shape = 's32[1]{0}', space=sflag, size = 0x4, scoped, tag = 'scoped memory for landing_predictor_forward.1']
    #allocation6 [shape = 'u8[32768]{0}', space=vmem, size = 0x8000, scoped, tag = 'input window, operand 7, single buffered']
    #allocation7 [shape = 'u8[32768]{0}', space=vmem, size = 0x8000, scoped, tag = 'input window, operand 9, single buffered']
    #allocation8 [shape = 's32[1]{0}', space=sflag, size = 0x4, scoped, tag = 'scoped memory for landing_predictor_forward.1']
    #allocation9 [shape = 'u8[32768]{0}', space=vmem, size = 0x8000, scoped, tag = 'input window, operand 11, single buffered']
    %18 = vsyncpa [#allocation3], 0
    %19 = vsyncpa [#allocation5], 0
    %20 = vsyncpa [#allocation8], 0
    loop: start=0, step=1, limit=4
    $region2: #{landing_predictor_forward.1} parent=1 // loop_pre_header
      _
    $region3: #{landing_predictor_forward.1} parent=1 // loop_header
      %s22 = sphi 0, %s26
      %p23 = scmp.ge.s32.totalorder %s22, 4
      %s32 = sphi 0, %s34
      %s35 = sphi 0, %s32
      %s36 = sphi 0, %s35
      %s52 = sphi 0, %s36
      %s56 = sphi 0, %s56
      %s58 = sphi 0, %s56
      %s59 = sphi 0, %s58
      %s73 = sphi 0, %s59
      %s77 = sphi 0, %s77
      %s79 = sphi 0, %s77
      %s80 = sphi 0, %s79
      %s94 = sphi 0, %s80
      %s98 = sphi 0, %s98
      %s100 = sphi 0, %s98
      %s101 = sphi 0, %s100
      %s115 = sphi 0, %s101
      %s119 = sphi 0, %s119
      %s121 = sphi 0, %s119
      %s122 = sphi 0, %s121
      %s136 = sphi 0, %s122
      %s140 = sphi 0, %s140
      %s142 = sphi 0, %s140
      %s143 = sphi 0, %s142
      %s157 = sphi 0, %s143
      %s161 = sphi 0, %s161
      %s163 = sphi 0, %s161
      %s164 = sphi 0, %s163
      %s178 = sphi 0, %s164
      %s182 = sphi 0, %s182
      %s184 = sphi 0, %s182
      %s185 = sphi 0, %s184
      %s199 = sphi 0, %s185
      %s203 = sphi 0, %s203
      %s205 = sphi 0, %s203
      %s206 = sphi 0, %s205
      %s220 = sphi 0, %s206
      %s224 = sphi 0, %s224
      %s226 = sphi 0, %s224
      %s227 = sphi 0, %s226
      %s241 = sphi 0, %s227
      %s245 = sphi 0, %s245
      %s247 = sphi 0, %s245
      %s248 = sphi 0, %s247
      %s262 = sphi 0, %s248
      %s266 = sphi 0, %s266
      %s268 = sphi 0, %s266
      %s269 = sphi 0, %s268
      %s283 = sphi 0, %s269
      %s287 = sphi 0, %s287
      %s289 = sphi 0, %s287
      %s290 = sphi 0, %s289
      %s304 = sphi 0, %s290
      %s310 = sphi 0, %s312
      %s313 = sphi 0, %s310
      %s314 = sphi 0, %s313
      %s330 = sphi 0, %s314
    $region4: #{landing_predictor_forward.1} parent=1 // loop_header_branch
      %25 = sbr.rel (%p23) target = $region8
    $region5: #{landing_predictor_forward.1} parent=1 // loop_body
      %s27 = ssub.s32 %s22, 1
      %s28 = ssub.s32 %s22, 2
      %s29 = sadd.s32 %s22, 1
      %s30 = ssub.s32 %s22, %s29
      %p31 = scmp.eq.s32.totalorder %s30, 0
      %s33 = sadd.s32 %s32, 1
      %s34 = scalar_select %p31, %s32, %s33
      %p37 = pneg %p31
      %p38 = scmp.eq.s32.totalorder %s22, 1
      %p39 = por %p37, %p38
      %p40 = scmp.ne.s32.totalorder %s32, %s35
      %p41 = scmp.eq.s32.totalorder %s22, 0
      %p42 = por %p40, %p41
      %p43 = scmp.ne.s32.totalorder %s32, %s35
      %p44 = scmp.eq.s32.totalorder %s27, 1
      %p45 = por %p43, %p44
      %p46 = scmp.ne.s32.totalorder %s35, %s36
      %p47 = scmp.eq.s32.totalorder %s27, 0
      %p48 = por %p46, %p47
      %p49 = scmp.ne.s32.totalorder %s35, %s36
      %p50 = scmp.eq.s32.totalorder %s28, 1
      %p51 = por %p49, %p50
      %p53 = scmp.ne.s32.totalorder %s36, %s52
      %p54 = scmp.eq.s32.totalorder %s28, 0
      %p55 = por %p53, %p54
      %s57 = sadd.s32 %s56, 1
      %p60 = scmp.eq.s32.totalorder %s22, 1
      %p61 = scmp.ne.s32.totalorder %s56, %s58
      %p62 = scmp.eq.s32.totalorder %s22, 0
      %p63 = por %p61, %p62
      %p64 = scmp.ne.s32.totalorder %s56, %s58
      %p65 = scmp.eq.s32.totalorder %s27, 1
      %p66 = por %p64, %p65
      %p67 = scmp.ne.s32.totalorder %s58, %s59
      %p68 = scmp.eq.s32.totalorder %s27, 0
      %p69 = por %p67, %p68
      %p70 = scmp.ne.s32.totalorder %s58, %s59
      %p71 = scmp.eq.s32.totalorder %s28, 1
      %p72 = por %p70, %p71
      %p74 = scmp.ne.s32.totalorder %s59, %s73
      %p75 = scmp.eq.s32.totalorder %s28, 0
      %p76 = por %p74, %p75
      %s78 = sadd.s32 %s77, 1
      %p81 = scmp.eq.s32.totalorder %s22, 1
      %p82 = scmp.ne.s32.totalorder %s77, %s79
      %p83 = scmp.eq.s32.totalorder %s22, 0
      %p84 = por %p82, %p83
      %p85 = scmp.ne.s32.totalorder %s77, %s79
      %p86 = scmp.eq.s32.totalorder %s27, 1
      %p87 = por %p85, %p86
      %p88 = scmp.ne.s32.totalorder %s79, %s80
      %p89 = scmp.eq.s32.totalorder %s27, 0
      %p90 = por %p88, %p89
      %p91 = scmp.ne.s32.totalorder %s79, %s80
      %p92 = scmp.eq.s32.totalorder %s28, 1
      %p93 = por %p91, %p92
      %p95 = scmp.ne.s32.totalorder %s80, %s94
      %p96 = scmp.eq.s32.totalorder %s28, 0
      %p97 = por %p95, %p96
      %s99 = sadd.s32 %s98, 1
      %p102 = scmp.eq.s32.totalorder %s22, 1
      %p103 = scmp.ne.s32.totalorder %s98, %s100
      %p104 = scmp.eq.s32.totalorder %s22, 0
      %p105 = por %p103, %p104
      %p106 = scmp.ne.s32.totalorder %s98, %s100
      %p107 = scmp.eq.s32.totalorder %s27, 1
      %p108 = por %p106, %p107
      %p109 = scmp.ne.s32.totalorder %s100, %s101
      %p110 = scmp.eq.s32.totalorder %s27, 0
      %p111 = por %p109, %p110
      %p112 = scmp.ne.s32.totalorder %s100, %s101
      %p113 = scmp.eq.s32.totalorder %s28, 1
      %p114 = por %p112, %p113
      %p116 = scmp.ne.s32.totalorder %s101, %s115
      %p117 = scmp.eq.s32.totalorder %s28, 0
      %p118 = por %p116, %p117
      %s120 = sadd.s32 %s119, 1
      %p123 = scmp.eq.s32.totalorder %s22, 1
      %p124 = scmp.ne.s32.totalorder %s119, %s121
      %p125 = scmp.eq.s32.totalorder %s22, 0
      %p126 = por %p124, %p125
      %p127 = scmp.ne.s32.totalorder %s119, %s121
      %p128 = scmp.eq.s32.totalorder %s27, 1
      %p129 = por %p127, %p128
      %p130 = scmp.ne.s32.totalorder %s121, %s122
      %p131 = scmp.eq.s32.totalorder %s27, 0
      %p132 = por %p130, %p131
      %p133 = scmp.ne.s32.totalorder %s121, %s122
      %p134 = scmp.eq.s32.totalorder %s28, 1
      %p135 = por %p133, %p134
      %p137 = scmp.ne.s32.totalorder %s122, %s136
      %p138 = scmp.eq.s32.totalorder %s28, 0
      %p139 = por %p137, %p138
      %s141 = sadd.s32 %s140, 1
      %p144 = scmp.eq.s32.totalorder %s22, 1
      %p145 = scmp.ne.s32.totalorder %s140, %s142
      %p146 = scmp.eq.s32.totalorder %s22, 0
      %p147 = por %p145, %p146
      %p148 = scmp.ne.s32.totalorder %s140, %s142
      %p149 = scmp.eq.s32.totalorder %s27, 1
      %p150 = por %p148, %p149
      %p151 = scmp.ne.s32.totalorder %s142, %s143
      %p152 = scmp.eq.s32.totalorder %s27, 0
      %p153 = por %p151, %p152
      %p154 = scmp.ne.s32.totalorder %s142, %s143
      %p155 = scmp.eq.s32.totalorder %s28, 1
      %p156 = por %p154, %p155
      %p158 = scmp.ne.s32.totalorder %s143, %s157
      %p159 = scmp.eq.s32.totalorder %s28, 0
      %p160 = por %p158, %p159
      %s162 = sadd.s32 %s161, 1
      %p165 = scmp.eq.s32.totalorder %s22, 1
      %p166 = scmp.ne.s32.totalorder %s161, %s163
      %p167 = scmp.eq.s32.totalorder %s22, 0
      %p168 = por %p166, %p167
      %p169 = scmp.ne.s32.totalorder %s161, %s163
      %p170 = scmp.eq.s32.totalorder %s27, 1
      %p171 = por %p169, %p170
      %p172 = scmp.ne.s32.totalorder %s163, %s164
      %p173 = scmp.eq.s32.totalorder %s27, 0
      %p174 = por %p172, %p173
      %p175 = scmp.ne.s32.totalorder %s163, %s164
      %p176 = scmp.eq.s32.totalorder %s28, 1
      %p177 = por %p175, %p176
      %p179 = scmp.ne.s32.totalorder %s164, %s178
      %p180 = scmp.eq.s32.totalorder %s28, 0
      %p181 = por %p179, %p180
      %s183 = sadd.s32 %s182, 1
      %p186 = scmp.eq.s32.totalorder %s22, 1
      %p187 = scmp.ne.s32.totalorder %s182, %s184
      %p188 = scmp.eq.s32.totalorder %s22, 0
      %p189 = por %p187, %p188
      %p190 = scmp.ne.s32.totalorder %s182, %s184
      %p191 = scmp.eq.s32.totalorder %s27, 1
      %p192 = por %p190, %p191
      %p193 = scmp.ne.s32.totalorder %s184, %s185
      %p194 = scmp.eq.s32.totalorder %s27, 0
      %p195 = por %p193, %p194
      %p196 = scmp.ne.s32.totalorder %s184, %s185
      %p197 = scmp.eq.s32.totalorder %s28, 1
      %p198 = por %p196, %p197
      %p200 = scmp.ne.s32.totalorder %s185, %s199
      %p201 = scmp.eq.s32.totalorder %s28, 0
      %p202 = por %p200, %p201
      %s204 = sadd.s32 %s203, 1
      %p207 = scmp.eq.s32.totalorder %s22, 1
      %p208 = scmp.ne.s32.totalorder %s203, %s205
      %p209 = scmp.eq.s32.totalorder %s22, 0
      %p210 = por %p208, %p209
      %p211 = scmp.ne.s32.totalorder %s203, %s205
      %p212 = scmp.eq.s32.totalorder %s27, 1
      %p213 = por %p211, %p212
      %p214 = scmp.ne.s32.totalorder %s205, %s206
      %p215 = scmp.eq.s32.totalorder %s27, 0
      %p216 = por %p214, %p215
      %p217 = scmp.ne.s32.totalorder %s205, %s206
      %p218 = scmp.eq.s32.totalorder %s28, 1
      %p219 = por %p217, %p218
      %p221 = scmp.ne.s32.totalorder %s206, %s220
      %p222 = scmp.eq.s32.totalorder %s28, 0
      %p223 = por %p221, %p222
      %s225 = sadd.s32 %s224, 1
      %p228 = scmp.eq.s32.totalorder %s22, 1
      %p229 = scmp.ne.s32.totalorder %s224, %s226
      %p230 = scmp.eq.s32.totalorder %s22, 0
      %p231 = por %p229, %p230
      %p232 = scmp.ne.s32.totalorder %s224, %s226
      %p233 = scmp.eq.s32.totalorder %s27, 1
      %p234 = por %p232, %p233
      %p235 = scmp.ne.s32.totalorder %s226, %s227
      %p236 = scmp.eq.s32.totalorder %s27, 0
      %p237 = por %p235, %p236
      %p238 = scmp.ne.s32.totalorder %s226, %s227
      %p239 = scmp.eq.s32.totalorder %s28, 1
      %p240 = por %p238, %p239
      %p242 = scmp.ne.s32.totalorder %s227, %s241
      %p243 = scmp.eq.s32.totalorder %s28, 0
      %p244 = por %p242, %p243
      %s246 = sadd.s32 %s245, 1
      %p249 = scmp.eq.s32.totalorder %s22, 1
      %p250 = scmp.ne.s32.totalorder %s245, %s247
      %p251 = scmp.eq.s32.totalorder %s22, 0
      %p252 = por %p250, %p251
      %p253 = scmp.ne.s32.totalorder %s245, %s247
      %p254 = scmp.eq.s32.totalorder %s27, 1
      %p255 = por %p253, %p254
      %p256 = scmp.ne.s32.totalorder %s247, %s248
      %p257 = scmp.eq.s32.totalorder %s27, 0
      %p258 = por %p256, %p257
      %p259 = scmp.ne.s32.totalorder %s247, %s248
      %p260 = scmp.eq.s32.totalorder %s28, 1
      %p261 = por %p259, %p260
      %p263 = scmp.ne.s32.totalorder %s248, %s262
      %p264 = scmp.eq.s32.totalorder %s28, 0
      %p265 = por %p263, %p264
      %s267 = sadd.s32 %s266, 1
      %p270 = scmp.eq.s32.totalorder %s22, 1
      %p271 = scmp.ne.s32.totalorder %s266, %s268
      %p272 = scmp.eq.s32.totalorder %s22, 0
      %p273 = por %p271, %p272
      %p274 = scmp.ne.s32.totalorder %s266, %s268
      %p275 = scmp.eq.s32.totalorder %s27, 1
      %p276 = por %p274, %p275
      %p277 = scmp.ne.s32.totalorder %s268, %s269
      %p278 = scmp.eq.s32.totalorder %s27, 0
      %p279 = por %p277, %p278
      %p280 = scmp.ne.s32.totalorder %s268, %s269
      %p281 = scmp.eq.s32.totalorder %s28, 1
      %p282 = por %p280, %p281
      %p284 = scmp.ne.s32.totalorder %s269, %s283
      %p285 = scmp.eq.s32.totalorder %s28, 0
      %p286 = por %p284, %p285
      %s288 = sadd.s32 %s287, 1
      %p291 = scmp.eq.s32.totalorder %s22, 1
      %p292 = scmp.ne.s32.totalorder %s287, %s289
      %p293 = scmp.eq.s32.totalorder %s22, 0
      %p294 = por %p292, %p293
      %p295 = scmp.ne.s32.totalorder %s287, %s289
      %p296 = scmp.eq.s32.totalorder %s27, 1
      %p297 = por %p295, %p296
      %p298 = scmp.ne.s32.totalorder %s289, %s290
      %p299 = scmp.eq.s32.totalorder %s27, 0
      %p300 = por %p298, %p299
      %p301 = scmp.ne.s32.totalorder %s289, %s290
      %p302 = scmp.eq.s32.totalorder %s28, 1
      %p303 = por %p301, %p302
      %p305 = scmp.ne.s32.totalorder %s290, %s304
      %p306 = scmp.eq.s32.totalorder %s28, 0
      %p307 = por %p305, %p306
      %s308 = ssub.s32 %s22, %s29
      %p309 = scmp.eq.s32.totalorder %s308, 0
      %s311 = sadd.s32 %s310, 1
      %s312 = scalar_select %p309, %s310, %s311
      %p315 = pneg %p309
      %p316 = scmp.eq.s32.totalorder %s22, 1
      %p317 = por %p315, %p316
      %p318 = scmp.ne.s32.totalorder %s310, %s313
      %p319 = scmp.eq.s32.totalorder %s22, 0
      %p320 = por %p318, %p319
      %p321 = scmp.ne.s32.totalorder %s310, %s313
      %p322 = scmp.eq.s32.totalorder %s27, 1
      %p323 = por %p321, %p322
      %p324 = scmp.ne.s32.totalorder %s313, %s314
      %p325 = scmp.eq.s32.totalorder %s27, 0
      %p326 = por %p324, %p325
      %p327 = scmp.ne.s32.totalorder %s313, %s314
      %p328 = scmp.eq.s32.totalorder %s28, 1
      %p329 = por %p327, %p328
      %p331 = scmp.ne.s32.totalorder %s314, %s330
      %p332 = scmp.eq.s32.totalorder %s28, 0
      %p333 = por %p331, %p332
      %p334 = scmp.le.s32.totalorder 1, %s22
      %p335 = scmp.lt.s32.totalorder %s22, 3
      %p336 = pnand %p334, %p335
      %p337 = pneg %p336
      // Predicated region
      $region9: #{landing_predictor_forward.1} parent=5 // pred_check
        _
      $region10: #{landing_predictor_forward.1} parent=5 // pred_check_branch
        %339 = sbr.rel (%p336) target = $region12
      $region11: #{landing_predictor_forward.1} parent=5 // pred_region
        %s340 = ssub.s32 %s22, 1
        // Predicated region
        $region13: #{landing_predictor_forward.1} parent=11 // pred_check
          %p341 = pneg %p69
        $region14: #{landing_predictor_forward.1} parent=11 // pred_check_branch
          %343 = sbr.rel (%p341) target = $region16
        $region15: #{landing_predictor_forward.1} parent=11 // pred_region
          %s345 = ssub.s32 256, 256
          %346 = vsyncadd [#allocation3], %s345
          %s348 = sshll.u32 [#allocation2], 4
          %s349 = int_to_ptr.vmem [resolvable:$true] %s348
          %351 = dma.hbm_to_vmem [thread:$0]  %s1, 256, %s349, [#allocation3]
        $region16: #{landing_predictor_forward.1} parent=11 // pred_fallthru
          _
        // Predicated region
        $region17: #{landing_predictor_forward.1} parent=11 // pred_check
          %p352 = pneg %p90
        $region18: #{landing_predictor_forward.1} parent=11 // pred_check_branch
          %354 = sbr.rel (%p352) target = $region20
        $region19: #{landing_predictor_forward.1} parent=11 // pred_region
          _
        $region20: #{landing_predictor_forward.1} parent=11 // pred_fallthru
          _
        // Predicated region
        $region21: #{landing_predictor_forward.1} parent=11 // pred_check
          %p355 = pneg %p111
        $region22: #{landing_predictor_forward.1} parent=11 // pred_check_branch
          %357 = sbr.rel (%p355) target = $region24
        $region23: #{landing_predictor_forward.1} parent=11 // pred_region
          _
        $region24: #{landing_predictor_forward.1} parent=11 // pred_fallthru
          _
        // Predicated region
        $region25: #{landing_predictor_forward.1} parent=11 // pred_check
          %p358 = pneg %p132
        $region26: #{landing_predictor_forward.1} parent=11 // pred_check_branch
          %360 = sbr.rel (%p358) target = $region28
        $region27: #{landing_predictor_forward.1} parent=11 // pred_region
          _
        $region28: #{landing_predictor_forward.1} parent=11 // pred_fallthru
          _
        // Predicated region
        $region29: #{landing_predictor_forward.1} parent=11 // pred_check
          %p361 = pneg %p153
        $region30: #{landing_predictor_forward.1} parent=11 // pred_check_branch
          %363 = sbr.rel (%p361) target = $region32
        $region31: #{landing_predictor_forward.1} parent=11 // pred_region
          %s365 = ssub.s32 2048, 2048
          %366 = vsyncadd [#allocation5], %s365
          %s367 = sshll.u32 [#allocation4], 4
          %s368 = int_to_ptr.vmem [resolvable:$true] %s367
          %373 = dma.hbm_to_vmem [thread:$0]  %s5, 2048, %s368, [#allocation5], 64, 64, 4
        $region32: #{landing_predictor_forward.1} parent=11 // pred_fallthru
          _
        // Predicated region
        $region33: #{landing_predictor_forward.1} parent=11 // pred_check
          %p374 = pneg %p174
        $region34: #{landing_predictor_forward.1} parent=11 // pred_check_branch
          %376 = sbr.rel (%p374) target = $region36
        $region35: #{landing_predictor_forward.1} parent=11 // pred_region
          _
        $region36: #{landing_predictor_forward.1} parent=11 // pred_fallthru
          _
        // Predicated region
        $region37: #{landing_predictor_forward.1} parent=11 // pred_check
          %p377 = pneg %p195
        $region38: #{landing_predictor_forward.1} parent=11 // pred_check_branch
          %379 = sbr.rel (%p377) target = $region40
        $region39: #{landing_predictor_forward.1} parent=11 // pred_region
          %s381 = ssub.s32 1024, 1024
          %382 = vsyncadd [#allocation5], %s381
          %s383 = sshll.u32 [#allocation6], 4
          %s384 = int_to_ptr.vmem [resolvable:$true] %s383
          %389 = dma.hbm_to_vmem [thread:$0]  %s7, 1024, %s384, [#allocation5], 64, 64, 4
        $region40: #{landing_predictor_forward.1} parent=11 // pred_fallthru
          _
        // Predicated region
        $region41: #{landing_predictor_forward.1} parent=11 // pred_check
          %p390 = pneg %p216
        $region42: #{landing_predictor_forward.1} parent=11 // pred_check_branch
          %392 = sbr.rel (%p390) target = $region44
        $region43: #{landing_predictor_forward.1} parent=11 // pred_region
          _
        $region44: #{landing_predictor_forward.1} parent=11 // pred_fallthru
          _
        // Predicated region
        $region45: #{landing_predictor_forward.1} parent=11 // pred_check
          %p393 = pneg %p237
        $region46: #{landing_predictor_forward.1} parent=11 // pred_check_branch
          %395 = sbr.rel (%p393) target = $region48
        $region47: #{landing_predictor_forward.1} parent=11 // pred_region
          %s397 = ssub.s32 1024, 1024
          %398 = vsyncadd [#allocation8], %s397
          %s399 = sshll.u32 [#allocation7], 4
          %s400 = int_to_ptr.vmem [resolvable:$true] %s399
          %405 = dma.hbm_to_vmem [thread:$0]  %s9, 1024, %s400, [#allocation8], 64, 64, 4
        $region48: #{landing_predictor_forward.1} parent=11 // pred_fallthru
          _
        // Predicated region
        $region49: #{landing_predictor_forward.1} parent=11 // pred_check
          %p406 = pneg %p258
        $region50: #{landing_predictor_forward.1} parent=11 // pred_check_branch
          %408 = sbr.rel (%p406) target = $region52
        $region51: #{landing_predictor_forward.1} parent=11 // pred_region
          _
        $region52: #{landing_predictor_forward.1} parent=11 // pred_fallthru
          _
        // Predicated region
        $region53: #{landing_predictor_forward.1} parent=11 // pred_check
          %p409 = pneg %p279
        $region54: #{landing_predictor_forward.1} parent=11 // pred_check_branch
          %411 = sbr.rel (%p409) target = $region56
        $region55: #{landing_predictor_forward.1} parent=11 // pred_region
          %s413 = ssub.s32 1024, 1024
          %414 = vsyncadd [#allocation8], %s413
          %s415 = sshll.u32 [#allocation9], 4
          %s416 = int_to_ptr.vmem [resolvable:$true] %s415
          %421 = dma.hbm_to_vmem [thread:$0]  %s11, 1024, %s416, [#allocation8], 64, 64, 4
        $region56: #{landing_predictor_forward.1} parent=11 // pred_fallthru
          _
        // Predicated region
        $region57: #{landing_predictor_forward.1} parent=11 // pred_check
          %p422 = pneg %p300
        $region58: #{landing_predictor_forward.1} parent=11 // pred_check_branch
          %424 = sbr.rel (%p422) target = $region60
        $region59: #{landing_predictor_forward.1} parent=11 // pred_region
          _
        $region60: #{landing_predictor_forward.1} parent=11 // pred_fallthru
          _
      $region12: #{landing_predictor_forward.1} parent=5 // pred_fallthru
        _
      %p425 = scmp.lt.s32.totalorder %s22, 2
      // Predicated region
      $region61: #{landing_predictor_forward.1} parent=5 // pred_check
        %p426 = pneg %p425
      $region62: #{landing_predictor_forward.1} parent=5 // pred_check_branch
        %428 = sbr.rel (%p426) target = $region64
      $region63: #{landing_predictor_forward.1} parent=5 // pred_region
        // Predicated region
        $region65: #{landing_predictor_forward.1} parent=63 // pred_check
          %p429 = pneg %p42
        $region66: #{landing_predictor_forward.1} parent=63 // pred_check_branch
          %431 = sbr.rel (%p429) target = $region68
        $region67: #{landing_predictor_forward.1} parent=63 // pred_region
          %s432 = smul.u32 19, %s22
          %p433 = scmp.lt.s32.totalorder %s432, 37
          %s434 = scalar_select %p433, %s432, 37
          %s435 = smul.addr %s434, 4
          %s436 = scalar_lea.vmem %s0, %s435
          %s437 = smul.u32 19, %s22
        $region68: #{landing_predictor_forward.1} parent=63 // pred_fallthru
          _
      $region64: #{landing_predictor_forward.1} parent=5 // pred_fallthru
        _
      %p438 = scmp.le.s32.totalorder 1, %s22
      %p439 = scmp.lt.s32.totalorder %s22, 3
      %p440 = pnand %p438, %p439
      %p441 = pneg %p440
      // Predicated region
      $region69: #{landing_predictor_forward.1} parent=5 // pred_check
        _
      $region70: #{landing_predictor_forward.1} parent=5 // pred_check_branch
        %443 = sbr.rel (%p440) target = $region72
      $region71: #{landing_predictor_forward.1} parent=5 // pred_region
        %s444 = ssub.s32 %s22, 1
        // Predicated region
        $region73: #{landing_predictor_forward.1} parent=71 // pred_check
          %p445 = pneg %p69
        $region74: #{landing_predictor_forward.1} parent=71 // pred_check_branch
          %447 = sbr.rel (%p445) target = $region76
        $region75: #{landing_predictor_forward.1} parent=71 // pred_region
          %448 = dma.done [#allocation3], 256
        $region76: #{landing_predictor_forward.1} parent=71 // pred_fallthru
          _
        // Predicated region
        $region77: #{landing_predictor_forward.1} parent=71 // pred_check
          %p449 = pneg %p153
        $region78: #{landing_predictor_forward.1} parent=71 // pred_check_branch
          %451 = sbr.rel (%p449) target = $region80
        $region79: #{landing_predictor_forward.1} parent=71 // pred_region
          %452 = dma.done [#allocation5], 2048
        $region80: #{landing_predictor_forward.1} parent=71 // pred_fallthru
          _
        // Predicated region
        $region81: #{landing_predictor_forward.1} parent=71 // pred_check
          %p453 = pneg %p195
        $region82: #{landing_predictor_forward.1} parent=71 // pred_check_branch
          %455 = sbr.rel (%p453) target = $region84
        $region83: #{landing_predictor_forward.1} parent=71 // pred_region
          %456 = dma.done [#allocation5], 1024
        $region84: #{landing_predictor_forward.1} parent=71 // pred_fallthru
          _
        // Predicated region
        $region85: #{landing_predictor_forward.1} parent=71 // pred_check
          %p457 = pneg %p237
        $region86: #{landing_predictor_forward.1} parent=71 // pred_check_branch
          %459 = sbr.rel (%p457) target = $region88
        $region87: #{landing_predictor_forward.1} parent=71 // pred_region
          %460 = dma.done [#allocation8], 1024
        $region88: #{landing_predictor_forward.1} parent=71 // pred_fallthru
          _
        // Predicated region
        $region89: #{landing_predictor_forward.1} parent=71 // pred_check
          %p461 = pneg %p279
        $region90: #{landing_predictor_forward.1} parent=71 // pred_check_branch
          %463 = sbr.rel (%p461) target = $region92
        $region91: #{landing_predictor_forward.1} parent=71 // pred_region
          %464 = dma.done [#allocation8], 1024
        $region92: #{landing_predictor_forward.1} parent=71 // pred_fallthru
          _
        %s465 = smul.u32 19, %s27
        %p466 = scmp.lt.s32.totalorder %s465, 37
        %s467 = scalar_select %p466, %s465, 37
        %s468 = smul.addr %s467, 4
        %s469 = scalar_lea.vmem %s0, %s468
        %p470 = pneg %p48
        %p471 = pneg %p45
        %p472 = pneg %p69
        %p473 = pneg %p66
        %p474 = pneg %p90
        %p475 = pneg %p87
        %p476 = pneg %p111
        %p477 = pneg %p108
        %p478 = pneg %p132
        %p479 = pneg %p129
        %p480 = pneg %p153
        %p481 = pneg %p150
        %p482 = pneg %p174
        %p483 = pneg %p171
        %p484 = pneg %p195
        %p485 = pneg %p192
        %p486 = pneg %p216
        %p487 = pneg %p213
        %p488 = pneg %p237
        %p489 = pneg %p234
        %p490 = pneg %p258
        %p491 = pneg %p255
        %p492 = pneg %p279
        %p493 = pneg %p276
        %p494 = pneg %p300
        %p495 = pneg %p297
        %p496 = pneg %p326
        %p497 = pneg %p323
        %s498 = smul.u32 19, %s27
        %p499 = scmp.lt.s32.totalorder %s498, 37
        %s500 = scalar_select %p499, %s498, 37
        %s501 = smul.addr %s500, 8
        %s502 = scalar_lea.vmem %s13, %s501
        %s503 = smul.u32 19, %s27
        %p504 = scmp.lt.s32.totalorder %s503, 37
        %s505 = scalar_select %p504, %s503, 37
        %s506 = smul.addr %s505, 4
        %s507 = scalar_lea.vmem %s0, %s506
        %s508 = smul.u32 19, %s27
        %s509 = smul.u32 19, %s27
        %p510 = scmp.lt.s32.totalorder %s509, 37
        %s511 = scalar_select %p510, %s509, 37
        %s512 = smul.addr %s511, 8
        %s513 = scalar_lea.vmem %s13, %s512
        %s514 = smul.u32 19, %s27
        %v516 = vld [vmem:[%s507] sm:$0xf]
        %v517 = vld [vmem:[%s507 + $0x4] sm:$0xf]
        %v518 = vld [vmem:[%s507 + $0x8] sm:$0xf]
        %v519 = vld [vmem:[%s507 + $0xc] sm:$0xf]
        %v520 = vld [vmem:[%s507 + $0x10] sm:$0xf]
        %v521 = vld [vmem:[%s507 + $0x14] sm:$0xf]
        %v522 = vld [vmem:[%s507 + $0x18] sm:$0xf]
        %v523 = vld [vmem:[%s507 + $0x1c] sm:$0xf]
        %v524 = vld [vmem:[%s507 + $0x20] sm:$0xf]
        %v525 = vld [vmem:[%s507 + $0x24] sm:$0xf]
        %v526 = vld [vmem:[%s507 + $0x28] sm:$0xf]
        %v527 = vld [vmem:[%s507 + $0x2c] sm:$0xf]
        %v528 = vld [vmem:[%s507 + $0x30] sm:$0xf]
        %v529 = vld [vmem:[%s507 + $0x34] sm:$0xf]
        %v530 = vld [vmem:[%s507 + $0x38] sm:$0xf]
        %v531 = vld [vmem:[%s507 + $0x3c] sm:$0xf]
        %v532 = vld [vmem:[%s507 + $0x40] sm:$0xf]
        %v533 = vld [vmem:[%s507 + $0x44] sm:$0xf]
        %v534 = vld [vmem:[%s507 + $0x48] sm:$0xf]
        %v535 = vld [vmem:[#allocation2] sm:$0xff]
        %v536 = vld [vmem:[#allocation2 + $0x8] sm:$0xff]
        %v537 = vld [vmem:[%s2] sm:$0xf]
        %v539 = vlaneseq
        %v540 = vshrl.u32 %v539, 7
        %v541 = vsub.s32 0, %v540
        %v542 = vrot.slane %v537, %v541
        %v543 = vlaneseq
        %v544 = vshrl.u32 %v543, 7
        %v545 = vsub.s32 1, %v544
        %v546 = vrot.slane %v537, %v545
        %v547 = vlaneseq
        %v548 = vshrl.u32 %v547, 7
        %v549 = vsub.s32 2, %v548
        %v550 = vrot.slane %v537, %v549
        %v551 = vlaneseq
        %v552 = vshrl.u32 %v551, 7
        %v553 = vsub.s32 3, %v552
        %v554 = vrot.slane %v537, %v553
        %v578 = vunpack.c.l.b16 %v516
        %v579 = vunpack.c.l.b16 %v517
        %v580 = vunpack.c.l.b16 %v518
        %v581 = vunpack.c.l.b16 %v519
        %v582 = vunpack.c.l.b16 %v520
        %v583 = vunpack.c.l.b16 %v521
        %v584 = vunpack.c.l.b16 %v522
        %v585 = vunpack.c.l.b16 %v523
        %v586 = vunpack.c.l.b16 %v524
        %v587 = vunpack.c.l.b16 %v525
        %v588 = vunpack.c.l.b16 %v526
        %v589 = vunpack.c.l.b16 %v527
        %v590 = vunpack.c.l.b16 %v528
        %v591 = vunpack.c.l.b16 %v529
        %v592 = vunpack.c.l.b16 %v530
        %v593 = vunpack.c.l.b16 %v531
        %v594 = vunpack.c.l.b16 %v532
        %v595 = vunpack.c.l.b16 %v533
        %v596 = vunpack.c.l.b16 %v534
        %v597 = vpack.c.b16 %v579, %v578
        %v598 = vpack.c.b16 %v581, %v580
        %v599 = vpack.c.b16 %v583, %v582
        %v600 = vpack.c.b16 %v585, %v584
        %v601 = vpack.c.b16 %v587, %v586
        %v602 = vpack.c.b16 %v589, %v588
        %v603 = vpack.c.b16 %v591, %v590
        %v604 = vpack.c.b16 %v593, %v592
        %v605 = vpack.c.b16 %v595, %v594
        %v606 = vpack.c.b16 %v596, %v596
        %v609 = vunpack.c.l.b16 %v535
        %v610 = vunpack.c.h.b16 %v535
        %v611 = vunpack.c.l.b16 %v536
        %v612 = vunpack.c.h.b16 %v536
        %v613 = vpack.c.b16 %v609, %v609
        %v614 = vpack.c.b16 %v610, %v610
        %v615 = vpack.c.b16 %v611, %v611
        %v616 = vpack.c.b16 %v612, %v612
        %vm617 = vcmask 64512
        %v619 = vsel %vm617, %v597, 0
        %v622 = vsel %vm617, %v598, 0
        %v625 = vsel %vm617, %v599, 0
        %v628 = vsel %vm617, %v600, 0
        %v631 = vsel %vm617, %v601, 0
        %v634 = vsel %vm617, %v602, 0
        %v637 = vsel %vm617, %v603, 0
        %v640 = vsel %vm617, %v604, 0
        %v643 = vsel %vm617, %v605, 0
        %v646 = vsel %vm617, %v606, 0
        %vm648 = vcmask 1043456
        %v650 = vsel %vm648, %v613, 0
        %v653 = vsel %vm648, %v614, 0
        %v656 = vsel %vm648, %v615, 0
        %v659 = vsel %vm648, %v616, 0
        %661 = vmatprep.subr.bf16.mxu0 %v653
        %662 = vmatpush1.bf16.msra.mxu0 %v650
        %663 = vmatprep.subr.bf16.mxu0 0
        %664 = vmatpush1.bf16.msra.mxu0 0
        %665 = vmatprep.subr.bf16.mxu0 0
        %666 = vmatpush1.bf16.msra.mxu0 0
        %667 = vmatprep.subr.bf16.mxu0 0
        %668 = vmatpush1.bf16.msra.mxu0 0
        %669 = vmatprep.subr.bf16.mxu0 0
        %670 = vmatpush1.bf16.msra.mxu0 0
        %671 = vmatprep.subr.bf16.mxu0 0
        %672 = vmatpush1.bf16.msra.mxu0 0
        %673 = vmatprep.subr.bf16.mxu0 0
        %674 = vmatpush1.bf16.msra.mxu0 0
        %675 = vmatprep.subr.bf16.mxu0 0
        %676 = vmatpush1.bf16.msra.mxu0 0
        %677 = vmatprep.subr.bf16.mxu0 0
        %678 = vmatpush1.bf16.msra.mxu0 0
        %679 = vmatprep.subr.bf16.mxu0 0
        %680 = vmatpush1.bf16.msra.mxu0 0
        %681 = vmatprep.subr.bf16.mxu0 0
        %682 = vmatpush1.bf16.msra.mxu0 0
        %683 = vmatprep.subr.bf16.mxu0 0
        %684 = vmatpush1.bf16.msra.mxu0 0
        %685 = vmatprep.subr.bf16.mxu0 0
        %686 = vmatpush1.bf16.msra.mxu0 0
        %687 = vmatprep.subr.bf16.mxu0 0
        %688 = vmatpush1.bf16.msra.mxu0 0
        %689 = vmatprep.subr.bf16.mxu0 0
        %690 = vmatpush1.bf16.msra.mxu0 0
        %691 = vmatprep.subr.bf16.mxu0 0
        %692 = vmatpush1.bf16.msra.mxu0 0
        %693 = vmatprep.mubr.bf16.mxu0 0
        %694 = vmatmul.mubr.bf16.gmra.mrb[0].mxu0 %v619
        %v695 = vpop.f32.mrb[0].mxu0
        %v696 = vadd.f32 %v542, %v695
        %v697 = vpop.f32.mrb[0].mxu0
        %v698 = vadd.f32 %v546, %v697
        %v699 = vpop.f32.mrb[0].mxu0
        %v700 = vadd.f32 %v542, %v699
        %v701 = vpop.f32.mrb[0].mxu0
        %v702 = vadd.f32 %v546, %v701
        %703 = vmatprep.mubr.bf16.mxu0 0
        %704 = vmatmul.mubr.bf16.gmra.mrb[0].mxu0 %v622
        %v705 = vpop.f32.mrb[0].mxu0
        %v706 = vadd.f32 %v542, %v705
        %v707 = vpop.f32.mrb[0].mxu0
        %v708 = vadd.f32 %v546, %v707
        %v709 = vpop.f32.mrb[0].mxu0
        %v710 = vadd.f32 %v542, %v709
        %v711 = vpop.f32.mrb[0].mxu0
        %v712 = vadd.f32 %v546, %v711
        %713 = vmatprep.mubr.bf16.mxu0 0
        %714 = vmatmul.mubr.bf16.gmra.mrb[0].mxu0 %v625
        %v715 = vpop.f32.mrb[0].mxu0
        %v716 = vadd.f32 %v542, %v715
        %v717 = vpop.f32.mrb[0].mxu0
        %v718 = vadd.f32 %v546, %v717
        %v719 = vpop.f32.mrb[0].mxu0
        %v720 = vadd.f32 %v542, %v719
        %v721 = vpop.f32.mrb[0].mxu0
        %v722 = vadd.f32 %v546, %v721
        %723 = vmatprep.mubr.bf16.mxu0 0
        %724 = vmatmul.mubr.bf16.gmra.mrb[0].mxu0 %v628
        %v725 = vpop.f32.mrb[0].mxu0
        %v726 = vadd.f32 %v542, %v725
        %v727 = vpop.f32.mrb[0].mxu0
        %v728 = vadd.f32 %v546, %v727
        %v729 = vpop.f32.mrb[0].mxu0
        %v730 = vadd.f32 %v542, %v729
        %v731 = vpop.f32.mrb[0].mxu0
        %v732 = vadd.f32 %v546, %v731
        %733 = vmatprep.mubr.bf16.mxu0 0
        %734 = vmatmul.mubr.bf16.gmra.mrb[0].mxu0 %v631
        %v735 = vpop.f32.mrb[0].mxu0
        %v736 = vadd.f32 %v542, %v735
        %v737 = vpop.f32.mrb[0].mxu0
        %v738 = vadd.f32 %v546, %v737
        %v739 = vpop.f32.mrb[0].mxu0
        %v740 = vadd.f32 %v542, %v739
        %v741 = vpop.f32.mrb[0].mxu0
        %v742 = vadd.f32 %v546, %v741
        %743 = vmatprep.mubr.bf16.mxu0 0
        %744 = vmatmul.mubr.bf16.gmra.mrb[0].mxu0 %v634
        %v745 = vpop.f32.mrb[0].mxu0
        %v746 = vadd.f32 %v542, %v745
        %v747 = vpop.f32.mrb[0].mxu0
        %v748 = vadd.f32 %v546, %v747
        %v749 = vpop.f32.mrb[0].mxu0
        %v750 = vadd.f32 %v542, %v749
        %v751 = vpop.f32.mrb[0].mxu0
        %v752 = vadd.f32 %v546, %v751
        %753 = vmatprep.mubr.bf16.mxu0 0
        %754 = vmatmul.mubr.bf16.gmra.mrb[0].mxu0 %v637
        %v755 = vpop.f32.mrb[0].mxu0
        %v756 = vadd.f32 %v542, %v755
        %v757 = vpop.f32.mrb[0].mxu0
        %v758 = vadd.f32 %v546, %v757
        %v759 = vpop.f32.mrb[0].mxu0
        %v760 = vadd.f32 %v542, %v759
        %v761 = vpop.f32.mrb[0].mxu0
        %v762 = vadd.f32 %v546, %v761
        %763 = vmatprep.mubr.bf16.mxu0 0
        %764 = vmatmul.mubr.bf16.gmra.mrb[0].mxu0 %v640
        %v765 = vpop.f32.mrb[0].mxu0
        %v766 = vadd.f32 %v542, %v765
        %v767 = vpop.f32.mrb[0].mxu0
        %v768 = vadd.f32 %v546, %v767
        %v769 = vpop.f32.mrb[0].mxu0
        %v770 = vadd.f32 %v542, %v769
        %v771 = vpop.f32.mrb[0].mxu0
        %v772 = vadd.f32 %v546, %v771
        %773 = vmatprep.mubr.bf16.mxu0 0
        %774 = vmatmul.mubr.bf16.gmra.mrb[0].mxu0 %v643
        %v775 = vpop.f32.mrb[0].mxu0
        %v776 = vadd.f32 %v542, %v775
        %v777 = vpop.f32.mrb[0].mxu0
        %v778 = vadd.f32 %v546, %v777
        %v779 = vpop.f32.mrb[0].mxu0
        %v780 = vadd.f32 %v542, %v779
        %v781 = vpop.f32.mrb[0].mxu0
        %v782 = vadd.f32 %v546, %v781
        %783 = vmatprep.mubr.bf16.mxu0 0
        %784 = vmatmul.mubr.bf16.gmra.mrb[0].mxu0 %v646
        %v785 = vpop.f32.mrb[0].mxu0
        %v786 = vadd.f32 %v542, %v785
        %v787 = vpop.f32.mrb[0].mxu0
        %v788 = vadd.f32 %v546, %v787
        %v789 = vpop.f32.mrb[0].mxu0
        %v790 = vpop.f32.mrb[0].mxu0
        %791 = vdwg.mxu0
        %792 = vmatprep.subr.bf16.mxu0 %v659
        %793 = vmatpush1.bf16.msra.mxu0 %v656
        %794 = vmatprep.subr.bf16.mxu0 0
        %795 = vmatpush1.bf16.msra.mxu0 0
        %796 = vmatprep.subr.bf16.mxu0 0
        %797 = vmatpush1.bf16.msra.mxu0 0
        %798 = vmatprep.subr.bf16.mxu0 0
        %799 = vmatpush1.bf16.msra.mxu0 0
        %800 = vmatprep.subr.bf16.mxu0 0
        %801 = vmatpush1.bf16.msra.mxu0 0
        %802 = vmatprep.subr.bf16.mxu0 0
        %803 = vmatpush1.bf16.msra.mxu0 0
        %804 = vmatprep.subr.bf16.mxu0 0
        %805 = vmatpush1.bf16.msra.mxu0 0
        %806 = vmatprep.subr.bf16.mxu0 0
        %807 = vmatpush1.bf16.msra.mxu0 0
        %808 = vmatprep.subr.bf16.mxu0 0
        %809 = vmatpush1.bf16.msra.mxu0 0
        %810 = vmatprep.subr.bf16.mxu0 0
        %811 = vmatpush1.bf16.msra.mxu0 0
        %812 = vmatprep.subr.bf16.mxu0 0
        %813 = vmatpush1.bf16.msra.mxu0 0
        %814 = vmatprep.subr.bf16.mxu0 0
        %815 = vmatpush1.bf16.msra.mxu0 0
        %816 = vmatprep.subr.bf16.mxu0 0
        %817 = vmatpush1.bf16.msra.mxu0 0
        %818 = vmatprep.subr.bf16.mxu0 0
        %819 = vmatpush1.bf16.msra.mxu0 0
        %820 = vmatprep.subr.bf16.mxu0 0
        %821 = vmatpush1.bf16.msra.mxu0 0
        %822 = vmatprep.subr.bf16.mxu0 0
        %823 = vmatpush1.bf16.msra.mxu0 0
        %824 = vmatprep.mubr.bf16.mxu0 0
        %825 = vmatmul.mubr.bf16.gmra.mrb[0].mxu0 %v619
        %v826 = vpop.f32.mrb[0].mxu0
        %v827 = vadd.f32 %v550, %v826
        %v828 = vpop.f32.mrb[0].mxu0
        %v829 = vadd.f32 %v554, %v828
        %v830 = vpop.f32.mrb[0].mxu0
        %v831 = vadd.f32 %v550, %v830
        %v832 = vpop.f32.mrb[0].mxu0
        %v833 = vadd.f32 %v554, %v832
        %834 = vmatprep.mubr.bf16.mxu0 0
        %835 = vmatmul.mubr.bf16.gmra.mrb[0].mxu0 %v622
        %v836 = vpop.f32.mrb[0].mxu0
        %v837 = vadd.f32 %v550, %v836
        %v838 = vpop.f32.mrb[0].mxu0
        %v839 = vadd.f32 %v554, %v838
        %v840 = vpop.f32.mrb[0].mxu0
        %v841 = vadd.f32 %v550, %v840
        %v842 = vpop.f32.mrb[0].mxu0
        %v843 = vadd.f32 %v554, %v842
        %844 = vmatprep.mubr.bf16.mxu0 0
        %845 = vmatmul.mubr.bf16.gmra.mrb[0].mxu0 %v625
        %v846 = vpop.f32.mrb[0].mxu0
        %v847 = vadd.f32 %v550, %v846
        %v848 = vpop.f32.mrb[0].mxu0
        %v849 = vadd.f32 %v554, %v848
        %v850 = vpop.f32.mrb[0].mxu0
        %v851 = vadd.f32 %v550, %v850
        %v852 = vpop.f32.mrb[0].mxu0
        %v853 = vadd.f32 %v554, %v852
        %854 = vmatprep.mubr.bf16.mxu0 0
        %855 = vmatmul.mubr.bf16.gmra.mrb[0].mxu0 %v628
        %v856 = vpop.f32.mrb[0].mxu0
        %v857 = vadd.f32 %v550, %v856
        %v858 = vpop.f32.mrb[0].mxu0
        %v859 = vadd.f32 %v554, %v858
        %v860 = vpop.f32.mrb[0].mxu0
        %v861 = vadd.f32 %v550, %v860
        %v862 = vpop.f32.mrb[0].mxu0
        %v863 = vadd.f32 %v554, %v862
        %864 = vmatprep.mubr.bf16.mxu0 0
        %865 = vmatmul.mubr.bf16.gmra.mrb[0].mxu0 %v631
        %v866 = vpop.f32.mrb[0].mxu0
        %v867 = vadd.f32 %v550, %v866
        %v868 = vpop.f32.mrb[0].mxu0
        %v869 = vadd.f32 %v554, %v868
        %v870 = vpop.f32.mrb[0].mxu0
        %v871 = vadd.f32 %v550, %v870
        %v872 = vpop.f32.mrb[0].mxu0
        %v873 = vadd.f32 %v554, %v872
        %874 = vmatprep.mubr.bf16.mxu0 0
        %875 = vmatmul.mubr.bf16.gmra.mrb[0].mxu0 %v634
        %v876 = vpop.f32.mrb[0].mxu0
        %v877 = vadd.f32 %v550, %v876
        %v878 = vpop.f32.mrb[0].mxu0
        %v879 = vadd.f32 %v554, %v878
        %v880 = vpop.f32.mrb[0].mxu0
        %v881 = vadd.f32 %v550, %v880
        %v882 = vpop.f32.mrb[0].mxu0
        %v883 = vadd.f32 %v554, %v882
        %884 = vmatprep.mubr.bf16.mxu0 0
        %885 = vmatmul.mubr.bf16.gmra.mrb[0].mxu0 %v637
        %v886 = vpop.f32.mrb[0].mxu0
        %v887 = vadd.f32 %v550, %v886
        %v888 = vpop.f32.mrb[0].mxu0
        %v889 = vadd.f32 %v554, %v888
        %v890 = vpop.f32.mrb[0].mxu0
        %v891 = vadd.f32 %v550, %v890
        %v892 = vpop.f32.mrb[0].mxu0
        %v893 = vadd.f32 %v554, %v892
        %894 = vmatprep.mubr.bf16.mxu0 0
        %895 = vmatmul.mubr.bf16.gmra.mrb[0].mxu0 %v640
        %v896 = vpop.f32.mrb[0].mxu0
        %v897 = vadd.f32 %v550, %v896
        %v898 = vpop.f32.mrb[0].mxu0
        %v899 = vadd.f32 %v554, %v898
        %v900 = vpop.f32.mrb[0].mxu0
        %v901 = vadd.f32 %v550, %v900
        %v902 = vpop.f32.mrb[0].mxu0
        %v903 = vadd.f32 %v554, %v902
        %904 = vmatprep.mubr.bf16.mxu0 0
        %905 = vmatmul.mubr.bf16.gmra.mrb[0].mxu0 %v643
        %v906 = vpop.f32.mrb[0].mxu0
        %v907 = vadd.f32 %v550, %v906
        %v908 = vpop.f32.mrb[0].mxu0
        %v909 = vadd.f32 %v554, %v908
        %v910 = vpop.f32.mrb[0].mxu0
        %v911 = vadd.f32 %v550, %v910
        %v912 = vpop.f32.mrb[0].mxu0
        %v913 = vadd.f32 %v554, %v912
        %914 = vmatprep.mubr.bf16.mxu0 0
        %915 = vmatmul.mubr.bf16.gmra.mrb[0].mxu0 %v646
        %v916 = vpop.f32.mrb[0].mxu0
        %v917 = vadd.f32 %v550, %v916
        %v918 = vpop.f32.mrb[0].mxu0
        %v919 = vadd.f32 %v554, %v918
        %v920 = vpop.f32.mrb[0].mxu0
        %v921 = vpop.f32.mrb[0].mxu0
        %922 = vdwg.mxu0
        %v923 = vmul.f32 %v696, 0.1
        %v924 = vmul.f32 %v698, 0.1
        %v925 = vmul.f32 %v827, 0.1
        %v926 = vmul.f32 %v829, 0.1
        %v927 = vmul.f32 %v700, 0.1
        %v928 = vmul.f32 %v702, 0.1
        %v929 = vmul.f32 %v831, 0.1
        %v930 = vmul.f32 %v833, 0.1
        %v931 = vmul.f32 %v706, 0.1
        %v932 = vmul.f32 %v708, 0.1
        %v933 = vmul.f32 %v837, 0.1
        %v934 = vmul.f32 %v839, 0.1
        %v935 = vmul.f32 %v710, 0.1
        %v936 = vmul.f32 %v712, 0.1
        %v937 = vmul.f32 %v841, 0.1
        %v938 = vmul.f32 %v843, 0.1
        %v939 = vmul.f32 %v716, 0.1
        %v940 = vmul.f32 %v718, 0.1
        %v941 = vmul.f32 %v847, 0.1
        %v942 = vmul.f32 %v849, 0.1
        %v943 = vmul.f32 %v720, 0.1
        %v944 = vmul.f32 %v722, 0.1
        %v945 = vmul.f32 %v851, 0.1
        %v946 = vmul.f32 %v853, 0.1
        %v947 = vmul.f32 %v726, 0.1
        %v948 = vmul.f32 %v728, 0.1
        %v949 = vmul.f32 %v857, 0.1
        %v950 = vmul.f32 %v859, 0.1
        %v951 = vmul.f32 %v730, 0.1
        %v952 = vmul.f32 %v732, 0.1
        %v953 = vmul.f32 %v861, 0.1
        %v954 = vmul.f32 %v863, 0.1
        %v955 = vmul.f32 %v736, 0.1
        %v956 = vmul.f32 %v738, 0.1
        %v957 = vmul.f32 %v867, 0.1
        %v958 = vmul.f32 %v869, 0.1
        %v959 = vmul.f32 %v740, 0.1
        %v960 = vmul.f32 %v742, 0.1
        %v961 = vmul.f32 %v871, 0.1
        %v962 = vmul.f32 %v873, 0.1
        %v963 = vmul.f32 %v746, 0.1
        %v964 = vmul.f32 %v748, 0.1
        %v965 = vmul.f32 %v877, 0.1
        %v966 = vmul.f32 %v879, 0.1
        %v967 = vmul.f32 %v750, 0.1
        %v968 = vmul.f32 %v752, 0.1
        %v969 = vmul.f32 %v881, 0.1
        %v970 = vmul.f32 %v883, 0.1
        %v971 = vmul.f32 %v756, 0.1
        %v972 = vmul.f32 %v758, 0.1
        %v973 = vmul.f32 %v887, 0.1
        %v974 = vmul.f32 %v889, 0.1
        %v975 = vmul.f32 %v760, 0.1
        %v976 = vmul.f32 %v762, 0.1
        %v977 = vmul.f32 %v891, 0.1
        %v978 = vmul.f32 %v893, 0.1
        %v979 = vmul.f32 %v766, 0.1
        %v980 = vmul.f32 %v768, 0.1
        %v981 = vmul.f32 %v897, 0.1
        %v982 = vmul.f32 %v899, 0.1
        %v983 = vmul.f32 %v770, 0.1
        %v984 = vmul.f32 %v772, 0.1
        %v985 = vmul.f32 %v901, 0.1
        %v986 = vmul.f32 %v903, 0.1
        %v987 = vmul.f32 %v776, 0.1
        %v988 = vmul.f32 %v778, 0.1
        %v989 = vmul.f32 %v907, 0.1
        %v990 = vmul.f32 %v909, 0.1
        %v991 = vmul.f32 %v780, 0.1
        %v992 = vmul.f32 %v782, 0.1
        %v993 = vmul.f32 %v911, 0.1
        %v994 = vmul.f32 %v913, 0.1
        %v995 = vmul.f32 %v786, 0.1
        %v996 = vmul.f32 %v788, 0.1
        %v997 = vmul.f32 %v917, 0.1
        %v998 = vmul.f32 %v919, 0.1
        %v999 = vmax.f32 %v696, %v923
        %v1000 = vmax.f32 %v698, %v924
        %v1001 = vmax.f32 %v827, %v925
        %v1002 = vmax.f32 %v829, %v926
        %v1003 = vmax.f32 %v700, %v927
        %v1004 = vmax.f32 %v702, %v928
        %v1005 = vmax.f32 %v831, %v929
        %v1006 = vmax.f32 %v833, %v930
        %v1007 = vmax.f32 %v706, %v931
        %v1008 = vmax.f32 %v708, %v932
        %v1009 = vmax.f32 %v837, %v933
        %v1010 = vmax.f32 %v839, %v934
        %v1011 = vmax.f32 %v710, %v935
        %v1012 = vmax.f32 %v712, %v936
        %v1013 = vmax.f32 %v841, %v937
        %v1014 = vmax.f32 %v843, %v938
        %v1015 = vmax.f32 %v716, %v939
        %v1016 = vmax.f32 %v718, %v940
        %v1017 = vmax.f32 %v847, %v941
        %v1018 = vmax.f32 %v849, %v942
        %v1019 = vmax.f32 %v720, %v943
        %v1020 = vmax.f32 %v722, %v944
        %v1021 = vmax.f32 %v851, %v945
        %v1022 = vmax.f32 %v853, %v946
        %v1023 = vmax.f32 %v726, %v947
        %v1024 = vmax.f32 %v728, %v948
        %v1025 = vmax.f32 %v857, %v949
        %v1026 = vmax.f32 %v859, %v950
        %v1027 = vmax.f32 %v730, %v951
        %v1028 = vmax.f32 %v732, %v952
        %v1029 = vmax.f32 %v861, %v953
        %v1030 = vmax.f32 %v863, %v954
        %v1031 = vmax.f32 %v736, %v955
        %v1032 = vmax.f32 %v738, %v956
        %v1033 = vmax.f32 %v867, %v957
        %v1034 = vmax.f32 %v869, %v958
        %v1035 = vmax.f32 %v740, %v959
        %v1036 = vmax.f32 %v742, %v960
        %v1037 = vmax.f32 %v871, %v961
        %v1038 = vmax.f32 %v873, %v962
        %v1039 = vmax.f32 %v746, %v963
        %v1040 = vmax.f32 %v748, %v964
        %v1041 = vmax.f32 %v877, %v965
        %v1042 = vmax.f32 %v879, %v966
        %v1043 = vmax.f32 %v750, %v967
        %v1044 = vmax.f32 %v752, %v968
        %v1045 = vmax.f32 %v881, %v969
        %v1046 = vmax.f32 %v883, %v970
        %v1047 = vmax.f32 %v756, %v971
        %v1048 = vmax.f32 %v758, %v972
        %v1049 = vmax.f32 %v887, %v973
        %v1050 = vmax.f32 %v889, %v974
        %v1051 = vmax.f32 %v760, %v975
        %v1052 = vmax.f32 %v762, %v976
        %v1053 = vmax.f32 %v891, %v977
        %v1054 = vmax.f32 %v893, %v978
        %v1055 = vmax.f32 %v766, %v979
        %v1056 = vmax.f32 %v768, %v980
        %v1057 = vmax.f32 %v897, %v981
        %v1058 = vmax.f32 %v899, %v982
        %v1059 = vmax.f32 %v770, %v983
        %v1060 = vmax.f32 %v772, %v984
        %v1061 = vmax.f32 %v901, %v985
        %v1062 = vmax.f32 %v903, %v986
        %v1063 = vmax.f32 %v776, %v987
        %v1064 = vmax.f32 %v778, %v988
        %v1065 = vmax.f32 %v907, %v989
        %v1066 = vmax.f32 %v909, %v990
        %v1067 = vmax.f32 %v780, %v991
        %v1068 = vmax.f32 %v782, %v992
        %v1069 = vmax.f32 %v911, %v993
        %v1070 = vmax.f32 %v913, %v994
        %v1071 = vmax.f32 %v786, %v995
        %v1072 = vmax.f32 %v788, %v996
        %v1073 = vmax.f32 %v917, %v997
        %v1074 = vmax.f32 %v919, %v998
        %v1075 = vpack.c.bf16 %v1003, %v999
        %v1076 = vpack.c.bf16 %v1004, %v1000
        %v1077 = vpack.c.bf16 %v1005, %v1001
        %v1078 = vpack.c.bf16 %v1006, %v1002
        %v1079 = vpack.c.bf16 %v1011, %v1007
        %v1080 = vpack.c.bf16 %v1012, %v1008
        %v1081 = vpack.c.bf16 %v1013, %v1009
        %v1082 = vpack.c.bf16 %v1014, %v1010
        %v1083 = vpack.c.bf16 %v1019, %v1015
        %v1084 = vpack.c.bf16 %v1020, %v1016
        %v1085 = vpack.c.bf16 %v1021, %v1017
        %v1086 = vpack.c.bf16 %v1022, %v1018
        %v1087 = vpack.c.bf16 %v1027, %v1023
        %v1088 = vpack.c.bf16 %v1028, %v1024
        %v1089 = vpack.c.bf16 %v1029, %v1025
        %v1090 = vpack.c.bf16 %v1030, %v1026
        %v1091 = vpack.c.bf16 %v1035, %v1031
        %v1092 = vpack.c.bf16 %v1036, %v1032
        %v1093 = vpack.c.bf16 %v1037, %v1033
        %v1094 = vpack.c.bf16 %v1038, %v1034
        %v1095 = vpack.c.bf16 %v1043, %v1039
        %v1096 = vpack.c.bf16 %v1044, %v1040
        %v1097 = vpack.c.bf16 %v1045, %v1041
        %v1098 = vpack.c.bf16 %v1046, %v1042
        %v1099 = vpack.c.bf16 %v1051, %v1047
        %v1100 = vpack.c.bf16 %v1052, %v1048
        %v1101 = vpack.c.bf16 %v1053, %v1049
        %v1102 = vpack.c.bf16 %v1054, %v1050
        %v1103 = vpack.c.bf16 %v1059, %v1055
        %v1104 = vpack.c.bf16 %v1060, %v1056
        %v1105 = vpack.c.bf16 %v1061, %v1057
        %v1106 = vpack.c.bf16 %v1062, %v1058
        %v1107 = vpack.c.bf16 %v1067, %v1063
        %v1108 = vpack.c.bf16 %v1068, %v1064
        %v1109 = vpack.c.bf16 %v1069, %v1065
        %v1110 = vpack.c.bf16 %v1070, %v1066
        %v1111 = vpack.c.bf16 %v1071, %v1071
        %v1112 = vpack.c.bf16 %v1072, %v1072
        %v1113 = vpack.c.bf16 %v1073, %v1073
        %v1114 = vpack.c.bf16 %v1074, %v1074
        %v1115 = vld [vmem:[%s3] sm:$0xff]
        %v1116 = vld [vmem:[%s3 + $0x8] sm:$0xff]
        %v1117 = vld [vmem:[%s3 + $0x10] sm:$0xff]
        %v1118 = vld [vmem:[%s3 + $0x18] sm:$0xff]
        %v1119 = vld [vmem:[%s3 + $0x20] sm:$0xff]
        %v1120 = vld [vmem:[%s3 + $0x28] sm:$0xff]
        %v1121 = vld [vmem:[%s3 + $0x30] sm:$0xff]
        %v1122 = vld [vmem:[%s3 + $0x38] sm:$0xff]
        %v1123 = vld [vmem:[%s3 + $0x40] sm:$0xff]
        %v1124 = vld [vmem:[%s3 + $0x48] sm:$0xff]
        %v1125 = vld [vmem:[%s3 + $0x50] sm:$0xff]
        %v1126 = vld [vmem:[%s3 + $0x58] sm:$0xff]
        %v1127 = vld [vmem:[%s3 + $0x60] sm:$0xff]
        %v1128 = vld [vmem:[%s3 + $0x68] sm:$0xff]
        %v1129 = vld [vmem:[%s3 + $0x70] sm:$0xff]
        %v1130 = vld [vmem:[%s3 + $0x78] sm:$0xff]
        %v1131 = vld [vmem:[%s3 + $0x80] sm:$0xff]
        %v1132 = vld [vmem:[%s3 + $0x88] sm:$0xff]
        %v1133 = vld [vmem:[%s3 + $0x90] sm:$0xff]
        %v1134 = vld [vmem:[%s3 + $0x98] sm:$0xff]
        %v1135 = vld [vmem:[%s3 + $0xa0] sm:$0xff]
        %v1136 = vld [vmem:[%s3 + $0xa8] sm:$0xff]
        %v1137 = vld [vmem:[%s3 + $0xb0] sm:$0xff]
        %v1138 = vld [vmem:[%s3 + $0xb8] sm:$0xff]
        %v1139 = vld [vmem:[%s3 + $0xc0] sm:$0xff]
        %v1140 = vld [vmem:[%s3 + $0xc8] sm:$0xff]
        %v1141 = vld [vmem:[%s3 + $0xd0] sm:$0xff]
        %v1142 = vld [vmem:[%s3 + $0xd8] sm:$0xff]
        %v1143 = vld [vmem:[%s3 + $0xe0] sm:$0xff]
        %v1144 = vld [vmem:[%s3 + $0xe8] sm:$0xff]
        %v1145 = vld [vmem:[%s3 + $0xf0] sm:$0xff]
        %v1146 = vld [vmem:[%s3 + $0xf8] sm:$0xff]
        %v1147 = vld [vmem:[%s3 + $0x100] sm:$0xff]
        %v1148 = vld [vmem:[%s3 + $0x108] sm:$0xff]
        %v1149 = vld [vmem:[%s3 + $0x110] sm:$0xff]
        %v1150 = vld [vmem:[%s3 + $0x118] sm:$0xff]
        %v1151 = vld [vmem:[%s3 + $0x120] sm:$0xff]
        %v1152 = vld [vmem:[%s3 + $0x128] sm:$0xff]
        %v1153 = vld [vmem:[%s3 + $0x130] sm:$0xff]
        %v1154 = vld [vmem:[%s3 + $0x138] sm:$0xff]
        %v1155 = vld [vmem:[%s3 + $0x140] sm:$0xff]
        %v1156 = vld [vmem:[%s3 + $0x148] sm:$0xff]
        %v1157 = vld [vmem:[%s3 + $0x150] sm:$0xff]
        %v1158 = vld [vmem:[%s3 + $0x158] sm:$0xff]
        %v1159 = vld [vmem:[%s3 + $0x160] sm:$0xff]
        %v1160 = vld [vmem:[%s3 + $0x168] sm:$0xff]
        %v1161 = vld [vmem:[%s3 + $0x170] sm:$0xff]
        %v1162 = vld [vmem:[%s3 + $0x178] sm:$0xff]
        %v1163 = vld [vmem:[%s3 + $0x180] sm:$0xff]
        %v1164 = vld [vmem:[%s3 + $0x188] sm:$0xff]
        %v1165 = vld [vmem:[%s3 + $0x190] sm:$0xff]
        %v1166 = vld [vmem:[%s3 + $0x198] sm:$0xff]
        %v1167 = vld [vmem:[%s3 + $0x1a0] sm:$0xff]
        %v1168 = vld [vmem:[%s3 + $0x1a8] sm:$0xff]
        %v1169 = vld [vmem:[%s3 + $0x1b0] sm:$0xff]
        %v1170 = vld [vmem:[%s3 + $0x1b8] sm:$0xff]
        %v1171 = vld [vmem:[%s3 + $0x1c0] sm:$0xff]
        %v1172 = vld [vmem:[%s3 + $0x1c8] sm:$0xff]
        %v1173 = vld [vmem:[%s3 + $0x1d0] sm:$0xff]
        %v1174 = vld [vmem:[%s3 + $0x1d8] sm:$0xff]
        %v1175 = vld [vmem:[%s3 + $0x1e0] sm:$0xff]
        %v1176 = vld [vmem:[%s3 + $0x1e8] sm:$0xff]
        %v1177 = vld [vmem:[%s3 + $0x1f0] sm:$0xff]
        %v1178 = vld [vmem:[%s3 + $0x1f8] sm:$0xff]
        %v1179 = vld [vmem:[%s4] sm:$0x3]
        %v1181 = vlaneseq
        %v1182 = vshrl.u32 %v1181, 7
        %v1183 = vsub.s32 0, %v1182
        %v1184 = vrot.slane %v1179, %v1183
        %v1185 = vlaneseq
        %v1186 = vshrl.u32 %v1185, 7
        %v1187 = vsub.s32 1, %v1186
        %v1188 = vrot.slane %v1179, %v1187
        %v1255 = vunpack.c.l.b16 %v1115
        %v1256 = vunpack.c.h.b16 %v1115
        %v1257 = vunpack.c.l.b16 %v1116
        %v1258 = vunpack.c.h.b16 %v1116
        %v1259 = vunpack.c.l.b16 %v1117
        %v1260 = vunpack.c.h.b16 %v1117
        %v1261 = vunpack.c.l.b16 %v1118
        %v1262 = vunpack.c.h.b16 %v1118
        %v1263 = vunpack.c.l.b16 %v1119
        %v1264 = vunpack.c.h.b16 %v1119
        %v1265 = vunpack.c.l.b16 %v1120
        %v1266 = vunpack.c.h.b16 %v1120
        %v1267 = vunpack.c.l.b16 %v1121
        %v1268 = vunpack.c.h.b16 %v1121
        %v1269 = vunpack.c.l.b16 %v1122
        %v1270 = vunpack.c.h.b16 %v1122
        %v1271 = vunpack.c.l.b16 %v1123
        %v1272 = vunpack.c.h.b16 %v1123
        %v1273 = vunpack.c.l.b16 %v1124
        %v1274 = vunpack.c.h.b16 %v1124
        %v1275 = vunpack.c.l.b16 %v1125
        %v1276 = vunpack.c.h.b16 %v1125
        %v1277 = vunpack.c.l.b16 %v1126
        %v1278 = vunpack.c.h.b16 %v1126
        %v1279 = vunpack.c.l.b16 %v1127
        %v1280 = vunpack.c.h.b16 %v1127
        %v1281 = vunpack.c.l.b16 %v1128
        %v1282 = vunpack.c.h.b16 %v1128
        %v1283 = vunpack.c.l.b16 %v1129
        %v1284 = vunpack.c.h.b16 %v1129
        %v1285 = vunpack.c.l.b16 %v1130
        %v1286 = vunpack.c.h.b16 %v1130
        %v1287 = vunpack.c.l.b16 %v1131
        %v1288 = vunpack.c.h.b16 %v1131
        %v1289 = vunpack.c.l.b16 %v1132
        %v1290 = vunpack.c.h.b16 %v1132
        %v1291 = vunpack.c.l.b16 %v1133
        %v1292 = vunpack.c.h.b16 %v1133
        %v1293 = vunpack.c.l.b16 %v1134
        %v1294 = vunpack.c.h.b16 %v1134
        %v1295 = vunpack.c.l.b16 %v1135
        %v1296 = vunpack.c.h.b16 %v1135
        %v1297 = vunpack.c.l.b16 %v1136
        %v1298 = vunpack.c.h.b16 %v1136
        %v1299 = vunpack.c.l.b16 %v1137
        %v1300 = vunpack.c.h.b16 %v1137
        %v1301 = vunpack.c.l.b16 %v1138
        %v1302 = vunpack.c.h.b16 %v1138
        %v1303 = vunpack.c.l.b16 %v1139
        %v1304 = vunpack.c.h.b16 %v1139
        %v1305 = vunpack.c.l.b16 %v1140
        %v1306 = vunpack.c.h.b16 %v1140
        %v1307 = vunpack.c.l.b16 %v1141
        %v1308 = vunpack.c.h.b16 %v1141
        %v1309 = vunpack.c.l.b16 %v1142
        %v1310 = vunpack.c.h.b16 %v1142
        %v1311 = vunpack.c.l.b16 %v1143
        %v1312 = vunpack.c.h.b16 %v1143
        %v1313 = vunpack.c.l.b16 %v1144
        %v1314 = vunpack.c.h.b16 %v1144
        %v1315 = vunpack.c.l.b16 %v1145
        %v1316 = vunpack.c.h.b16 %v1145
        %v1317 = vunpack.c.l.b16 %v1146
        %v1318 = vunpack.c.h.b16 %v1146
        %v1319 = vunpack.c.l.b16 %v1147
        %v1320 = vunpack.c.h.b16 %v1147
        %v1321 = vunpack.c.l.b16 %v1148
        %v1322 = vunpack.c.h.b16 %v1148
        %v1323 = vunpack.c.l.b16 %v1149
        %v1324 = vunpack.c.h.b16 %v1149
        %v1325 = vunpack.c.l.b16 %v1150
        %v1326 = vunpack.c.h.b16 %v1150
        %v1327 = vunpack.c.l.b16 %v1151
        %v1328 = vunpack.c.h.b16 %v1151
        %v1329 = vunpack.c.l.b16 %v1152
        %v1330 = vunpack.c.h.b16 %v1152
        %v1331 = vunpack.c.l.b16 %v1153
        %v1332 = vunpack.c.h.b16 %v1153
        %v1333 = vunpack.c.l.b16 %v1154
        %v1334 = vunpack.c.h.b16 %v1154
        %v1335 = vunpack.c.l.b16 %v1155
        %v1336 = vunpack.c.h.b16 %v1155
        %v1337 = vunpack.c.l.b16 %v1156
        %v1338 = vunpack.c.h.b16 %v1156
        %v1339 = vunpack.c.l.b16 %v1157
        %v1340 = vunpack.c.h.b16 %v1157
        %v1341 = vunpack.c.l.b16 %v1158
        %v1342 = vunpack.c.h.b16 %v1158
        %v1343 = vunpack.c.l.b16 %v1159
        %v1344 = vunpack.c.h.b16 %v1159
        %v1345 = vunpack.c.l.b16 %v1160
        %v1346 = vunpack.c.h.b16 %v1160
        %v1347 = vunpack.c.l.b16 %v1161
        %v1348 = vunpack.c.h.b16 %v1161
        %v1349 = vunpack.c.l.b16 %v1162
        %v1350 = vunpack.c.h.b16 %v1162
        %v1351 = vunpack.c.l.b16 %v1163
        %v1352 = vunpack.c.h.b16 %v1163
        %v1353 = vunpack.c.l.b16 %v1164
        %v1354 = vunpack.c.h.b16 %v1164
        %v1355 = vunpack.c.l.b16 %v1165
        %v1356 = vunpack.c.h.b16 %v1165
        %v1357 = vunpack.c.l.b16 %v1166
        %v1358 = vunpack.c.h.b16 %v1166
        %v1359 = vunpack.c.l.b16 %v1167
        %v1360 = vunpack.c.h.b16 %v1167
        %v1361 = vunpack.c.l.b16 %v1168
        %v1362 = vunpack.c.h.b16 %v1168
        %v1363 = vunpack.c.l.b16 %v1169
        %v1364 = vunpack.c.h.b16 %v1169
        %v1365 = vunpack.c.l.b16 %v1170
        %v1366 = vunpack.c.h.b16 %v1170
        %v1367 = vunpack.c.l.b16 %v1171
        %v1368 = vunpack.c.h.b16 %v1171
        %v1369 = vunpack.c.l.b16 %v1172
        %v1370 = vunpack.c.h.b16 %v1172
        %v1371 = vunpack.c.l.b16 %v1173
        %v1372 = vunpack.c.h.b16 %v1173
        %v1373 = vunpack.c.l.b16 %v1174
        %v1374 = vunpack.c.h.b16 %v1174
        %v1375 = vunpack.c.l.b16 %v1175
        %v1376 = vunpack.c.h.b16 %v1175
        %v1377 = vunpack.c.l.b16 %v1176
        %v1378 = vunpack.c.h.b16 %v1176
        %v1379 = vunpack.c.l.b16 %v1177
        %v1380 = vunpack.c.h.b16 %v1177
        %v1381 = vunpack.c.l.b16 %v1178
        %v1382 = vunpack.c.h.b16 %v1178
        %v1383 = vpack.c.b16 %v1257, %v1255
        %v1384 = vpack.c.b16 %v1258, %v1256
        %v1385 = vpack.c.b16 %v1261, %v1259
        %v1386 = vpack.c.b16 %v1262, %v1260
        %v1387 = vpack.c.b16 %v1265, %v1263
        %v1388 = vpack.c.b16 %v1266, %v1264
        %v1389 = vpack.c.b16 %v1269, %v1267
        %v1390 = vpack.c.b16 %v1270, %v1268
        %v1391 = vpack.c.b16 %v1273, %v1271
        %v1392 = vpack.c.b16 %v1274, %v1272
        %v1393 = vpack.c.b16 %v1277, %v1275
        %v1394 = vpack.c.b16 %v1278, %v1276
        %v1395 = vpack.c.b16 %v1281, %v1279
        %v1396 = vpack.c.b16 %v1282, %v1280
        %v1397 = vpack.c.b16 %v1285, %v1283
        %v1398 = vpack.c.b16 %v1286, %v1284
        %v1399 = vpack.c.b16 %v1289, %v1287
        %v1400 = vpack.c.b16 %v1290, %v1288
        %v1401 = vpack.c.b16 %v1293, %v1291
        %v1402 = vpack.c.b16 %v1294, %v1292
        %v1403 = vpack.c.b16 %v1297, %v1295
        %v1404 = vpack.c.b16 %v1298, %v1296
        %v1405 = vpack.c.b16 %v1301, %v1299
        %v1406 = vpack.c.b16 %v1302, %v1300
        %v1407 = vpack.c.b16 %v1305, %v1303
        %v1408 = vpack.c.b16 %v1306, %v1304
        %v1409 = vpack.c.b16 %v1309, %v1307
        %v1410 = vpack.c.b16 %v1310, %v1308
        %v1411 = vpack.c.b16 %v1313, %v1311
        %v1412 = vpack.c.b16 %v1314, %v1312
        %v1413 = vpack.c.b16 %v1317, %v1315
        %v1414 = vpack.c.b16 %v1318, %v1316
        %v1415 = vpack.c.b16 %v1321, %v1319
        %v1416 = vpack.c.b16 %v1322, %v1320
        %v1417 = vpack.c.b16 %v1325, %v1323
        %v1418 = vpack.c.b16 %v1326, %v1324
        %v1419 = vpack.c.b16 %v1329, %v1327
        %v1420 = vpack.c.b16 %v1330, %v1328
        %v1421 = vpack.c.b16 %v1333, %v1331
        %v1422 = vpack.c.b16 %v1334, %v1332
        %v1423 = vpack.c.b16 %v1337, %v1335
        %v1424 = vpack.c.b16 %v1338, %v1336
        %v1425 = vpack.c.b16 %v1341, %v1339
        %v1426 = vpack.c.b16 %v1342, %v1340
        %v1427 = vpack.c.b16 %v1345, %v1343
        %v1428 = vpack.c.b16 %v1346, %v1344
        %v1429 = vpack.c.b16 %v1349, %v1347
        %v1430 = vpack.c.b16 %v1350, %v1348
        %v1431 = vpack.c.b16 %v1353, %v1351
        %v1432 = vpack.c.b16 %v1354, %v1352
        %v1433 = vpack.c.b16 %v1357, %v1355
        %v1434 = vpack.c.b16 %v1358, %v1356
        %v1435 = vpack.c.b16 %v1361, %v1359
        %v1436 = vpack.c.b16 %v1362, %v1360
        %v1437 = vpack.c.b16 %v1365, %v1363
        %v1438 = vpack.c.b16 %v1366, %v1364
        %v1439 = vpack.c.b16 %v1369, %v1367
        %v1440 = vpack.c.b16 %v1370, %v1368
        %v1441 = vpack.c.b16 %v1373, %v1371
        %v1442 = vpack.c.b16 %v1374, %v1372
        %v1443 = vpack.c.b16 %v1377, %v1375
        %v1444 = vpack.c.b16 %v1378, %v1376
        %v1445 = vpack.c.b16 %v1381, %v1379
        %v1446 = vpack.c.b16 %v1382, %v1380
        %1511 = vmatprep.subr.bf16.mxu0 %v1384
        %1512 = vmatpush1.bf16.msra.mxu0 %v1383
        %1513 = vmatprep.subr.bf16.mxu0 %v1386
        %1514 = vmatpush1.bf16.msra.mxu0 %v1385
        %1515 = vmatprep.subr.bf16.mxu0 %v1388
        %1516 = vmatpush1.bf16.msra.mxu0 %v1387
        %1517 = vmatprep.subr.bf16.mxu0 %v1390
        %1518 = vmatpush1.bf16.msra.mxu0 %v1389
        %1519 = vmatprep.subr.bf16.mxu0 %v1392
        %1520 = vmatpush1.bf16.msra.mxu0 %v1391
        %1521 = vmatprep.subr.bf16.mxu0 %v1394
        %1522 = vmatpush1.bf16.msra.mxu0 %v1393
        %1523 = vmatprep.subr.bf16.mxu0 %v1396
        %1524 = vmatpush1.bf16.msra.mxu0 %v1395
        %1525 = vmatprep.subr.bf16.mxu0 %v1398
        %1526 = vmatpush1.bf16.msra.mxu0 %v1397
        %1527 = vmatprep.subr.bf16.mxu0 %v1400
        %1528 = vmatpush1.bf16.msra.mxu0 %v1399
        %1529 = vmatprep.subr.bf16.mxu0 %v1402
        %1530 = vmatpush1.bf16.msra.mxu0 %v1401
        %1531 = vmatprep.subr.bf16.mxu0 %v1404
        %1532 = vmatpush1.bf16.msra.mxu0 %v1403
        %1533 = vmatprep.subr.bf16.mxu0 %v1406
        %1534 = vmatpush1.bf16.msra.mxu0 %v1405
        %1535 = vmatprep.subr.bf16.mxu0 %v1408
        %1536 = vmatpush1.bf16.msra.mxu0 %v1407
        %1537 = vmatprep.subr.bf16.mxu0 %v1410
        %1538 = vmatpush1.bf16.msra.mxu0 %v1409
        %1539 = vmatprep.subr.bf16.mxu0 %v1412
        %1540 = vmatpush1.bf16.msra.mxu0 %v1411
        %1541 = vmatprep.subr.bf16.mxu0 %v1414
        %1542 = vmatpush1.bf16.msra.mxu0 %v1413
        %1543 = vmatprep.mubr.bf16.mxu0 %v1076
        %1544 = vmatmul.mubr.bf16.gmra.mrb[0].mxu0 %v1075
        %v1545 = vpop.f32.mrb[0].mxu0
        %v1546 = vadd.f32 %v1184, %v1545
        %v1547 = vpop.f32.mrb[0].mxu0
        %v1548 = vadd.f32 %v1188, %v1547
        %v1549 = vpop.f32.mrb[0].mxu0
        %v1550 = vadd.f32 %v1184, %v1549
        %v1551 = vpop.f32.mrb[0].mxu0
        %v1552 = vadd.f32 %v1188, %v1551
        %1553 = vmatprep.mubr.bf16.mxu0 %v1080
        %1554 = vmatmul.mubr.bf16.gmra.mrb[0].mxu0 %v1079
        %v1555 = vpop.f32.mrb[0].mxu0
        %v1556 = vadd.f32 %v1184, %v1555
        %v1557 = vpop.f32.mrb[0].mxu0
        %v1558 = vadd.f32 %v1188, %v1557
        %v1559 = vpop.f32.mrb[0].mxu0
        %v1560 = vadd.f32 %v1184, %v1559
        %v1561 = vpop.f32.mrb[0].mxu0
        %v1562 = vadd.f32 %v1188, %v1561
        %1563 = vmatprep.mubr.bf16.mxu0 %v1084
        %1564 = vmatmul.mubr.bf16.gmra.mrb[0].mxu0 %v1083
        %v1565 = vpop.f32.mrb[0].mxu0
        %v1566 = vadd.f32 %v1184, %v1565
        %v1567 = vpop.f32.mrb[0].mxu0
        %v1568 = vadd.f32 %v1188, %v1567
        %v1569 = vpop.f32.mrb[0].mxu0
        %v1570 = vadd.f32 %v1184, %v1569
        %v1571 = vpop.f32.mrb[0].mxu0
        %v1572 = vadd.f32 %v1188, %v1571
        %1573 = vmatprep.mubr.bf16.mxu0 %v1088
        %1574 = vmatmul.mubr.bf16.gmra.mrb[0].mxu0 %v1087
        %v1575 = vpop.f32.mrb[0].mxu0
        %v1576 = vadd.f32 %v1184, %v1575
        %v1577 = vpop.f32.mrb[0].mxu0
        %v1578 = vadd.f32 %v1188, %v1577
        %v1579 = vpop.f32.mrb[0].mxu0
        %v1580 = vadd.f32 %v1184, %v1579
        %v1581 = vpop.f32.mrb[0].mxu0
        %v1582 = vadd.f32 %v1188, %v1581
        %1583 = vmatprep.mubr.bf16.mxu0 %v1092
        %1584 = vmatmul.mubr.bf16.gmra.mrb[0].mxu0 %v1091
        %v1585 = vpop.f32.mrb[0].mxu0
        %v1586 = vadd.f32 %v1184, %v1585
        %v1587 = vpop.f32.mrb[0].mxu0
        %v1588 = vadd.f32 %v1188, %v1587
        %v1589 = vpop.f32.mrb[0].mxu0
        %v1590 = vadd.f32 %v1184, %v1589
        %v1591 = vpop.f32.mrb[0].mxu0
        %v1592 = vadd.f32 %v1188, %v1591
        %1593 = vmatprep.mubr.bf16.mxu0 %v1096
        %1594 = vmatmul.mubr.bf16.gmra.mrb[0].mxu0 %v1095
        %v1595 = vpop.f32.mrb[0].mxu0
        %v1596 = vadd.f32 %v1184, %v1595
        %v1597 = vpop.f32.mrb[0].mxu0
        %v1598 = vadd.f32 %v1188, %v1597
        %v1599 = vpop.f32.mrb[0].mxu0
        %v1600 = vadd.f32 %v1184, %v1599
        %v1601 = vpop.f32.mrb[0].mxu0
        %v1602 = vadd.f32 %v1188, %v1601
        %1603 = vmatprep.mubr.bf16.mxu0 %v1100
        %1604 = vmatmul.mubr.bf16.gmra.mrb[0].mxu0 %v1099
        %v1605 = vpop.f32.mrb[0].mxu0
        %v1606 = vadd.f32 %v1184, %v1605
        %v1607 = vpop.f32.mrb[0].mxu0
        %v1608 = vadd.f32 %v1188, %v1607
        %v1609 = vpop.f32.mrb[0].mxu0
        %v1610 = vadd.f32 %v1184, %v1609
        %v1611 = vpop.f32.mrb[0].mxu0
        %v1612 = vadd.f32 %v1188, %v1611
        %1613 = vmatprep.mubr.bf16.mxu0 %v1104
        %1614 = vmatmul.mubr.bf16.gmra.mrb[0].mxu0 %v1103
        %v1615 = vpop.f32.mrb[0].mxu0
        %v1616 = vadd.f32 %v1184, %v1615
        %v1617 = vpop.f32.mrb[0].mxu0
        %v1618 = vadd.f32 %v1188, %v1617
        %v1619 = vpop.f32.mrb[0].mxu0
        %v1620 = vadd.f32 %v1184, %v1619
        %v1621 = vpop.f32.mrb[0].mxu0
        %v1622 = vadd.f32 %v1188, %v1621
        %1623 = vmatprep.mubr.bf16.mxu0 %v1108
        %1624 = vmatmul.mubr.bf16.gmra.mrb[0].mxu0 %v1107
        %v1625 = vpop.f32.mrb[0].mxu0
        %v1626 = vadd.f32 %v1184, %v1625
        %v1627 = vpop.f32.mrb[0].mxu0
        %v1628 = vadd.f32 %v1188, %v1627
        %v1629 = vpop.f32.mrb[0].mxu0
        %v1630 = vadd.f32 %v1184, %v1629
        %v1631 = vpop.f32.mrb[0].mxu0
        %v1632 = vadd.f32 %v1188, %v1631
        %1633 = vmatprep.mubr.bf16.mxu0 %v1112
        %1634 = vmatmul.mubr.bf16.gmra.mrb[0].mxu0 %v1111
        %v1635 = vpop.f32.mrb[0].mxu0
        %v1636 = vadd.f32 %v1184, %v1635
        %v1637 = vpop.f32.mrb[0].mxu0
        %v1638 = vadd.f32 %v1188, %v1637
        %v1639 = vpop.f32.mrb[0].mxu0
        %v1640 = vpop.f32.mrb[0].mxu0
        %1641 = vdwg.mxu0
        %1642 = vmatprep.subr.bf16.mxu0 %v1416
        %1643 = vmatpush1.bf16.msra.mxu0 %v1415
        %1644 = vmatprep.subr.bf16.mxu0 %v1418
        %1645 = vmatpush1.bf16.msra.mxu0 %v1417
        %1646 = vmatprep.subr.bf16.mxu0 %v1420
        %1647 = vmatpush1.bf16.msra.mxu0 %v1419
        %1648 = vmatprep.subr.bf16.mxu0 %v1422
        %1649 = vmatpush1.bf16.msra.mxu0 %v1421
        %1650 = vmatprep.subr.bf16.mxu0 %v1424
        %1651 = vmatpush1.bf16.msra.mxu0 %v1423
        %1652 = vmatprep.subr.bf16.mxu0 %v1426
        %1653 = vmatpush1.bf16.msra.mxu0 %v1425
        %1654 = vmatprep.subr.bf16.mxu0 %v1428
        %1655 = vmatpush1.bf16.msra.mxu0 %v1427
        %1656 = vmatprep.subr.bf16.mxu0 %v1430
        %1657 = vmatpush1.bf16.msra.mxu0 %v1429
        %1658 = vmatprep.subr.bf16.mxu0 %v1432
        %1659 = vmatpush1.bf16.msra.mxu0 %v1431
        %1660 = vmatprep.subr.bf16.mxu0 %v1434
        %1661 = vmatpush1.bf16.msra.mxu0 %v1433
        %1662 = vmatprep.subr.bf16.mxu0 %v1436
        %1663 = vmatpush1.bf16.msra.mxu0 %v1435
        %1664 = vmatprep.subr.bf16.mxu0 %v1438
        %1665 = vmatpush1.bf16.msra.mxu0 %v1437
        %1666 = vmatprep.subr.bf16.mxu0 %v1440
        %1667 = vmatpush1.bf16.msra.mxu0 %v1439
        %1668 = vmatprep.subr.bf16.mxu0 %v1442
        %1669 = vmatpush1.bf16.msra.mxu0 %v1441
        %1670 = vmatprep.subr.bf16.mxu0 %v1444
        %1671 = vmatpush1.bf16.msra.mxu0 %v1443
        %1672 = vmatprep.subr.bf16.mxu0 %v1446
        %1673 = vmatpush1.bf16.msra.mxu0 %v1445
        %1674 = vmatprep.mubr.bf16.mxu0 %v1078
        %1675 = vmatmul.mubr.bf16.gmra.mrb[0].mxu0 %v1077
        %v1676 = vpop.f32.mrb[0].mxu0
        %v1677 = vadd.f32 %v1546, %v1676
        %v1678 = vpop.f32.mrb[0].mxu0
        %v1679 = vadd.f32 %v1548, %v1678
        %v1680 = vpop.f32.mrb[0].mxu0
        %v1681 = vadd.f32 %v1550, %v1680
        %v1682 = vpop.f32.mrb[0].mxu0
        %v1683 = vadd.f32 %v1552, %v1682
        %1684 = vmatprep.mubr.bf16.mxu0 %v1082
        %1685 = vmatmul.mubr.bf16.gmra.mrb[0].mxu0 %v1081
        %v1686 = vpop.f32.mrb[0].mxu0
        %v1687 = vadd.f32 %v1556, %v1686
        %v1688 = vpop.f32.mrb[0].mxu0
        %v1689 = vadd.f32 %v1558, %v1688
        %v1690 = vpop.f32.mrb[0].mxu0
        %v1691 = vadd.f32 %v1560, %v1690
        %v1692 = vpop.f32.mrb[0].mxu0
        %v1693 = vadd.f32 %v1562, %v1692
        %1694 = vmatprep.mubr.bf16.mxu0 %v1086
        %1695 = vmatmul.mubr.bf16.gmra.mrb[0].mxu0 %v1085
        %v1696 = vpop.f32.mrb[0].mxu0
        %v1697 = vadd.f32 %v1566, %v1696
        %v1698 = vpop.f32.mrb[0].mxu0
        %v1699 = vadd.f32 %v1568, %v1698
        %v1700 = vpop.f32.mrb[0].mxu0
        %v1701 = vadd.f32 %v1570, %v1700
        %v1702 = vpop.f32.mrb[0].mxu0
        %v1703 = vadd.f32 %v1572, %v1702
        %1704 = vmatprep.mubr.bf16.mxu0 %v1090
        %1705 = vmatmul.mubr.bf16.gmra.mrb[0].mxu0 %v1089
        %v1706 = vpop.f32.mrb[0].mxu0
        %v1707 = vadd.f32 %v1576, %v1706
        %v1708 = vpop.f32.mrb[0].mxu0
        %v1709 = vadd.f32 %v1578, %v1708
        %v1710 = vpop.f32.mrb[0].mxu0
        %v1711 = vadd.f32 %v1580, %v1710
        %v1712 = vpop.f32.mrb[0].mxu0
        %v1713 = vadd.f32 %v1582, %v1712
        %1714 = vmatprep.mubr.bf16.mxu0 %v1094
        %1715 = vmatmul.mubr.bf16.gmra.mrb[0].mxu0 %v1093
        %v1716 = vpop.f32.mrb[0].mxu0
        %v1717 = vadd.f32 %v1586, %v1716
        %v1718 = vpop.f32.mrb[0].mxu0
        %v1719 = vadd.f32 %v1588, %v1718
        %v1720 = vpop.f32.mrb[0].mxu0
        %v1721 = vadd.f32 %v1590, %v1720
        %v1722 = vpop.f32.mrb[0].mxu0
        %v1723 = vadd.f32 %v1592, %v1722
        %1724 = vmatprep.mubr.bf16.mxu0 %v1098
        %1725 = vmatmul.mubr.bf16.gmra.mrb[0].mxu0 %v1097
        %v1726 = vpop.f32.mrb[0].mxu0
        %v1727 = vadd.f32 %v1596, %v1726
        %v1728 = vpop.f32.mrb[0].mxu0
        %v1729 = vadd.f32 %v1598, %v1728
        %v1730 = vpop.f32.mrb[0].mxu0
        %v1731 = vadd.f32 %v1600, %v1730
        %v1732 = vpop.f32.mrb[0].mxu0
        %v1733 = vadd.f32 %v1602, %v1732
        %1734 = vmatprep.mubr.bf16.mxu0 %v1102
        %1735 = vmatmul.mubr.bf16.gmra.mrb[0].mxu0 %v1101
        %v1736 = vpop.f32.mrb[0].mxu0
        %v1737 = vadd.f32 %v1606, %v1736
        %v1738 = vpop.f32.mrb[0].mxu0
        %v1739 = vadd.f32 %v1608, %v1738
        %v1740 = vpop.f32.mrb[0].mxu0
        %v1741 = vadd.f32 %v1610, %v1740
        %v1742 = vpop.f32.mrb[0].mxu0
        %v1743 = vadd.f32 %v1612, %v1742
        %1744 = vmatprep.mubr.bf16.mxu0 %v1106
        %1745 = vmatmul.mubr.bf16.gmra.mrb[0].mxu0 %v1105
        %v1746 = vpop.f32.mrb[0].mxu0
        %v1747 = vadd.f32 %v1616, %v1746
        %v1748 = vpop.f32.mrb[0].mxu0
        %v1749 = vadd.f32 %v1618, %v1748
        %v1750 = vpop.f32.mrb[0].mxu0
        %v1751 = vadd.f32 %v1620, %v1750
        %v1752 = vpop.f32.mrb[0].mxu0
        %v1753 = vadd.f32 %v1622, %v1752
        %1754 = vmatprep.mubr.bf16.mxu0 %v1110
        %1755 = vmatmul.mubr.bf16.gmra.mrb[0].mxu0 %v1109
        %v1756 = vpop.f32.mrb[0].mxu0
        %v1757 = vadd.f32 %v1626, %v1756
        %v1758 = vpop.f32.mrb[0].mxu0
        %v1759 = vadd.f32 %v1628, %v1758
        %v1760 = vpop.f32.mrb[0].mxu0
        %v1761 = vadd.f32 %v1630, %v1760
        %v1762 = vpop.f32.mrb[0].mxu0
        %v1763 = vadd.f32 %v1632, %v1762
        %1764 = vmatprep.mubr.bf16.mxu0 %v1114
        %1765 = vmatmul.mubr.bf16.gmra.mrb[0].mxu0 %v1113
        %v1766 = vpop.f32.mrb[0].mxu0
        %v1767 = vadd.f32 %v1636, %v1766
        %v1768 = vpop.f32.mrb[0].mxu0
        %v1769 = vadd.f32 %v1638, %v1768
        %v1770 = vpop.f32.mrb[0].mxu0
        %v1771 = vpop.f32.mrb[0].mxu0
        %1772 = vdwg.mxu0
        %v1773 = vmul.f32 %v1677, 0.1
        %v1774 = vmul.f32 %v1679, 0.1
        %v1775 = vmul.f32 %v1681, 0.1
        %v1776 = vmul.f32 %v1683, 0.1
        %v1777 = vmul.f32 %v1687, 0.1
        %v1778 = vmul.f32 %v1689, 0.1
        %v1779 = vmul.f32 %v1691, 0.1
        %v1780 = vmul.f32 %v1693, 0.1
        %v1781 = vmul.f32 %v1697, 0.1
        %v1782 = vmul.f32 %v1699, 0.1
        %v1783 = vmul.f32 %v1701, 0.1
        %v1784 = vmul.f32 %v1703, 0.1
        %v1785 = vmul.f32 %v1707, 0.1
        %v1786 = vmul.f32 %v1709, 0.1
        %v1787 = vmul.f32 %v1711, 0.1
        %v1788 = vmul.f32 %v1713, 0.1
        %v1789 = vmul.f32 %v1717, 0.1
        %v1790 = vmul.f32 %v1719, 0.1
        %v1791 = vmul.f32 %v1721, 0.1
        %v1792 = vmul.f32 %v1723, 0.1
        %v1793 = vmul.f32 %v1727, 0.1
        %v1794 = vmul.f32 %v1729, 0.1
        %v1795 = vmul.f32 %v1731, 0.1
        %v1796 = vmul.f32 %v1733, 0.1
        %v1797 = vmul.f32 %v1737, 0.1
        %v1798 = vmul.f32 %v1739, 0.1
        %v1799 = vmul.f32 %v1741, 0.1
        %v1800 = vmul.f32 %v1743, 0.1
        %v1801 = vmul.f32 %v1747, 0.1
        %v1802 = vmul.f32 %v1749, 0.1
        %v1803 = vmul.f32 %v1751, 0.1
        %v1804 = vmul.f32 %v1753, 0.1
        %v1805 = vmul.f32 %v1757, 0.1
        %v1806 = vmul.f32 %v1759, 0.1
        %v1807 = vmul.f32 %v1761, 0.1
        %v1808 = vmul.f32 %v1763, 0.1
        %v1809 = vmul.f32 %v1767, 0.1
        %v1810 = vmul.f32 %v1769, 0.1
        %v1811 = vmax.f32 %v1677, %v1773
        %v1812 = vmax.f32 %v1679, %v1774
        %v1813 = vmax.f32 %v1681, %v1775
        %v1814 = vmax.f32 %v1683, %v1776
        %v1815 = vmax.f32 %v1687, %v1777
        %v1816 = vmax.f32 %v1689, %v1778
        %v1817 = vmax.f32 %v1691, %v1779
        %v1818 = vmax.f32 %v1693, %v1780
        %v1819 = vmax.f32 %v1697, %v1781
        %v1820 = vmax.f32 %v1699, %v1782
        %v1821 = vmax.f32 %v1701, %v1783
        %v1822 = vmax.f32 %v1703, %v1784
        %v1823 = vmax.f32 %v1707, %v1785
        %v1824 = vmax.f32 %v1709, %v1786
        %v1825 = vmax.f32 %v1711, %v1787
        %v1826 = vmax.f32 %v1713, %v1788
        %v1827 = vmax.f32 %v1717, %v1789
        %v1828 = vmax.f32 %v1719, %v1790
        %v1829 = vmax.f32 %v1721, %v1791
        %v1830 = vmax.f32 %v1723, %v1792
        %v1831 = vmax.f32 %v1727, %v1793
        %v1832 = vmax.f32 %v1729, %v1794
        %v1833 = vmax.f32 %v1731, %v1795
        %v1834 = vmax.f32 %v1733, %v1796
        %v1835 = vmax.f32 %v1737, %v1797
        %v1836 = vmax.f32 %v1739, %v1798
        %v1837 = vmax.f32 %v1741, %v1799
        %v1838 = vmax.f32 %v1743, %v1800
        %v1839 = vmax.f32 %v1747, %v1801
        %v1840 = vmax.f32 %v1749, %v1802
        %v1841 = vmax.f32 %v1751, %v1803
        %v1842 = vmax.f32 %v1753, %v1804
        %v1843 = vmax.f32 %v1757, %v1805
        %v1844 = vmax.f32 %v1759, %v1806
        %v1845 = vmax.f32 %v1761, %v1807
        %v1846 = vmax.f32 %v1763, %v1808
        %v1847 = vmax.f32 %v1767, %v1809
        %v1848 = vmax.f32 %v1769, %v1810
        %v1849 = vpack.c.bf16 %v1813, %v1811
        %v1850 = vpack.c.bf16 %v1814, %v1812
        %v1851 = vpack.c.bf16 %v1817, %v1815
        %v1852 = vpack.c.bf16 %v1818, %v1816
        %v1853 = vpack.c.bf16 %v1821, %v1819
        %v1854 = vpack.c.bf16 %v1822, %v1820
        %v1855 = vpack.c.bf16 %v1825, %v1823
        %v1856 = vpack.c.bf16 %v1826, %v1824
        %v1857 = vpack.c.bf16 %v1829, %v1827
        %v1858 = vpack.c.bf16 %v1830, %v1828
        %v1859 = vpack.c.bf16 %v1833, %v1831
        %v1860 = vpack.c.bf16 %v1834, %v1832
        %v1861 = vpack.c.bf16 %v1837, %v1835
        %v1862 = vpack.c.bf16 %v1838, %v1836
        %v1863 = vpack.c.bf16 %v1841, %v1839
        %v1864 = vpack.c.bf16 %v1842, %v1840
        %v1865 = vpack.c.bf16 %v1845, %v1843
        %v1866 = vpack.c.bf16 %v1846, %v1844
        %v1867 = vpack.c.bf16 %v1847, %v1847
        %v1868 = vpack.c.bf16 %v1848, %v1848
        %v1869 = vld [vmem:[#allocation4] sm:$0xf]
        %v1870 = vld [vmem:[#allocation4 + $0x4] sm:$0xf]
        %v1871 = vld [vmem:[#allocation4 + $0x8] sm:$0xf]
        %v1872 = vld [vmem:[#allocation4 + $0xc] sm:$0xf]
        %v1873 = vld [vmem:[#allocation4 + $0x10] sm:$0xf]
        %v1874 = vld [vmem:[#allocation4 + $0x14] sm:$0xf]
        %v1875 = vld [vmem:[#allocation4 + $0x18] sm:$0xf]
        %v1876 = vld [vmem:[#allocation4 + $0x1c] sm:$0xf]
        %v1877 = vld [vmem:[#allocation4 + $0x20] sm:$0xf]
        %v1878 = vld [vmem:[#allocation4 + $0x24] sm:$0xf]
        %v1879 = vld [vmem:[#allocation4 + $0x28] sm:$0xf]
        %v1880 = vld [vmem:[#allocation4 + $0x2c] sm:$0xf]
        %v1881 = vld [vmem:[#allocation4 + $0x30] sm:$0xf]
        %v1882 = vld [vmem:[#allocation4 + $0x34] sm:$0xf]
        %v1883 = vld [vmem:[#allocation4 + $0x38] sm:$0xf]
        %v1884 = vld [vmem:[#allocation4 + $0x3c] sm:$0xf]
        %v1885 = vld [vmem:[#allocation4 + $0x40] sm:$0xf]
        %v1886 = vld [vmem:[#allocation4 + $0x44] sm:$0xf]
        %v1887 = vld [vmem:[#allocation4 + $0x48] sm:$0xf]
        %v1888 = vld [vmem:[#allocation4 + $0x4c] sm:$0xf]
        %v1889 = vld [vmem:[#allocation4 + $0x50] sm:$0xf]
        %v1890 = vld [vmem:[#allocation4 + $0x54] sm:$0xf]
        %v1891 = vld [vmem:[#allocation4 + $0x58] sm:$0xf]
        %v1892 = vld [vmem:[#allocation4 + $0x5c] sm:$0xf]
        %v1893 = vld [vmem:[#allocation4 + $0x60] sm:$0xf]
        %v1894 = vld [vmem:[#allocation4 + $0x64] sm:$0xf]
        %v1895 = vld [vmem:[#allocation4 + $0x68] sm:$0xf]
        %v1896 = vld [vmem:[#allocation4 + $0x6c] sm:$0xf]
        %v1897 = vld [vmem:[#allocation4 + $0x70] sm:$0xf]
        %v1898 = vld [vmem:[#allocation4 + $0x74] sm:$0xf]
        %v1899 = vld [vmem:[#allocation4 + $0x78] sm:$0xf]
        %v1900 = vld [vmem:[#allocation4 + $0x7c] sm:$0xf]
        %v1901 = vld [vmem:[%s6] sm:$0x1]
        %v1903 = vlaneseq
        %v1904 = vshrl.u32 %v1903, 7
        %v1905 = vsub.s32 0, %v1904
        %v1906 = vrot.slane %v1901, %v1905
        %v1940 = vunpack.c.l.b16 %v1869
        %v1941 = vunpack.c.l.b16 %v1870
        %v1942 = vunpack.c.l.b16 %v1871
        %v1943 = vunpack.c.l.b16 %v1872
        %v1944 = vunpack.c.l.b16 %v1873
        %v1945 = vunpack.c.l.b16 %v1874
        %v1946 = vunpack.c.l.b16 %v1875
        %v1947 = vunpack.c.l.b16 %v1876
        %v1948 = vunpack.c.l.b16 %v1877
        %v1949 = vunpack.c.l.b16 %v1878
        %v1950 = vunpack.c.l.b16 %v1879
        %v1951 = vunpack.c.l.b16 %v1880
        %v1952 = vunpack.c.l.b16 %v1881
        %v1953 = vunpack.c.l.b16 %v1882
        %v1954 = vunpack.c.l.b16 %v1883
        %v1955 = vunpack.c.l.b16 %v1884
        %v1956 = vunpack.c.l.b16 %v1885
        %v1957 = vunpack.c.l.b16 %v1886
        %v1958 = vunpack.c.l.b16 %v1887
        %v1959 = vunpack.c.l.b16 %v1888
        %v1960 = vunpack.c.l.b16 %v1889
        %v1961 = vunpack.c.l.b16 %v1890
        %v1962 = vunpack.c.l.b16 %v1891
        %v1963 = vunpack.c.l.b16 %v1892
        %v1964 = vunpack.c.l.b16 %v1893
        %v1965 = vunpack.c.l.b16 %v1894
        %v1966 = vunpack.c.l.b16 %v1895
        %v1967 = vunpack.c.l.b16 %v1896
        %v1968 = vunpack.c.l.b16 %v1897
        %v1969 = vunpack.c.l.b16 %v1898
        %v1970 = vunpack.c.l.b16 %v1899
        %v1971 = vunpack.c.l.b16 %v1900
        %v1972 = vpack.c.b16 %v1941, %v1940
        %v1973 = vpack.c.b16 %v1943, %v1942
        %v1974 = vpack.c.b16 %v1945, %v1944
        %v1975 = vpack.c.b16 %v1947, %v1946
        %v1976 = vpack.c.b16 %v1949, %v1948
        %v1977 = vpack.c.b16 %v1951, %v1950
        %v1978 = vpack.c.b16 %v1953, %v1952
        %v1979 = vpack.c.b16 %v1955, %v1954
        %v1980 = vpack.c.b16 %v1957, %v1956
        %v1981 = vpack.c.b16 %v1959, %v1958
        %v1982 = vpack.c.b16 %v1961, %v1960
        %v1983 = vpack.c.b16 %v1963, %v1962
        %v1984 = vpack.c.b16 %v1965, %v1964
        %v1985 = vpack.c.b16 %v1967, %v1966
        %v1986 = vpack.c.b16 %v1969, %v1968
        %v1987 = vpack.c.b16 %v1971, %v1970
        %2004 = vmatprep.subr.bf16.mxu0 0
        %2005 = vmatpush1.bf16.msra.mxu0 %v1972
        %2006 = vmatprep.subr.bf16.mxu0 0
        %2007 = vmatpush1.bf16.msra.mxu0 %v1973
        %2008 = vmatprep.subr.bf16.mxu0 0
        %2009 = vmatpush1.bf16.msra.mxu0 %v1974
        %2010 = vmatprep.subr.bf16.mxu0 0
        %2011 = vmatpush1.bf16.msra.mxu0 %v1975
        %2012 = vmatprep.subr.bf16.mxu0 0
        %2013 = vmatpush1.bf16.msra.mxu0 %v1976
        %2014 = vmatprep.subr.bf16.mxu0 0
        %2015 = vmatpush1.bf16.msra.mxu0 %v1977
        %2016 = vmatprep.subr.bf16.mxu0 0
        %2017 = vmatpush1.bf16.msra.mxu0 %v1978
        %2018 = vmatprep.subr.bf16.mxu0 0
        %2019 = vmatpush1.bf16.msra.mxu0 %v1979
        %2020 = vmatprep.subr.bf16.mxu0 0
        %2021 = vmatpush1.bf16.msra.mxu0 %v1980
        %2022 = vmatprep.subr.bf16.mxu0 0
        %2023 = vmatpush1.bf16.msra.mxu0 %v1981
        %2024 = vmatprep.subr.bf16.mxu0 0
        %2025 = vmatpush1.bf16.msra.mxu0 %v1982
        %2026 = vmatprep.subr.bf16.mxu0 0
        %2027 = vmatpush1.bf16.msra.mxu0 %v1983
        %2028 = vmatprep.subr.bf16.mxu0 0
        %2029 = vmatpush1.bf16.msra.mxu0 %v1984
        %2030 = vmatprep.subr.bf16.mxu0 0
        %2031 = vmatpush1.bf16.msra.mxu0 %v1985
        %2032 = vmatprep.subr.bf16.mxu0 0
        %2033 = vmatpush1.bf16.msra.mxu0 %v1986
        %2034 = vmatprep.subr.bf16.mxu0 0
        %2035 = vmatpush1.bf16.msra.mxu0 %v1987
        %2036 = vmatprep.mubr.bf16.mxu0 %v1850
        %2037 = vmatmul.mubr.bf16.gmra.mrb[0].mxu0 %v1849
        %v2038 = vpop.f32.mrb[0].mxu0
        %v2039 = vadd.f32 %v1906, %v2038
        %v2040 = vpop.f32.mrb[0].mxu0
        %v2041 = vpop.f32.mrb[0].mxu0
        %v2042 = vadd.f32 %v1906, %v2041
        %v2043 = vpop.f32.mrb[0].mxu0
        %2044 = vmatprep.mubr.bf16.mxu0 %v1852
        %2045 = vmatmul.mubr.bf16.gmra.mrb[0].mxu0 %v1851
        %v2046 = vpop.f32.mrb[0].mxu0
        %v2047 = vadd.f32 %v1906, %v2046
        %v2048 = vpop.f32.mrb[0].mxu0
        %v2049 = vpop.f32.mrb[0].mxu0
        %v2050 = vadd.f32 %v1906, %v2049
        %v2051 = vpop.f32.mrb[0].mxu0
        %2052 = vmatprep.mubr.bf16.mxu0 %v1854
        %2053 = vmatmul.mubr.bf16.gmra.mrb[0].mxu0 %v1853
        %v2054 = vpop.f32.mrb[0].mxu0
        %v2055 = vadd.f32 %v1906, %v2054
        %v2056 = vpop.f32.mrb[0].mxu0
        %v2057 = vpop.f32.mrb[0].mxu0
        %v2058 = vadd.f32 %v1906, %v2057
        %v2059 = vpop.f32.mrb[0].mxu0
        %2060 = vmatprep.mubr.bf16.mxu0 %v1856
        %2061 = vmatmul.mubr.bf16.gmra.mrb[0].mxu0 %v1855
        %v2062 = vpop.f32.mrb[0].mxu0
        %v2063 = vadd.f32 %v1906, %v2062
        %v2064 = vpop.f32.mrb[0].mxu0
        %v2065 = vpop.f32.mrb[0].mxu0
        %v2066 = vadd.f32 %v1906, %v2065
        %v2067 = vpop.f32.mrb[0].mxu0
        %2068 = vmatprep.mubr.bf16.mxu0 %v1858
        %2069 = vmatmul.mubr.bf16.gmra.mrb[0].mxu0 %v1857
        %v2070 = vpop.f32.mrb[0].mxu0
        %v2071 = vadd.f32 %v1906, %v2070
        %v2072 = vpop.f32.mrb[0].mxu0
        %v2073 = vpop.f32.mrb[0].mxu0
        %v2074 = vadd.f32 %v1906, %v2073
        %v2075 = vpop.f32.mrb[0].mxu0
        %2076 = vmatprep.mubr.bf16.mxu0 %v1860
        %2077 = vmatmul.mubr.bf16.gmra.mrb[0].mxu0 %v1859
        %v2078 = vpop.f32.mrb[0].mxu0
        %v2079 = vadd.f32 %v1906, %v2078
        %v2080 = vpop.f32.mrb[0].mxu0
        %v2081 = vpop.f32.mrb[0].mxu0
        %v2082 = vadd.f32 %v1906, %v2081
        %v2083 = vpop.f32.mrb[0].mxu0
        %2084 = vmatprep.mubr.bf16.mxu0 %v1862
        %2085 = vmatmul.mubr.bf16.gmra.mrb[0].mxu0 %v1861
        %v2086 = vpop.f32.mrb[0].mxu0
        %v2087 = vadd.f32 %v1906, %v2086
        %v2088 = vpop.f32.mrb[0].mxu0
        %v2089 = vpop.f32.mrb[0].mxu0
        %v2090 = vadd.f32 %v1906, %v2089
        %v2091 = vpop.f32.mrb[0].mxu0
        %2092 = vmatprep.mubr.bf16.mxu0 %v1864
        %2093 = vmatmul.mubr.bf16.gmra.mrb[0].mxu0 %v1863
        %v2094 = vpop.f32.mrb[0].mxu0
        %v2095 = vadd.f32 %v1906, %v2094
        %v2096 = vpop.f32.mrb[0].mxu0
        %v2097 = vpop.f32.mrb[0].mxu0
        %v2098 = vadd.f32 %v1906, %v2097
        %v2099 = vpop.f32.mrb[0].mxu0
        %2100 = vmatprep.mubr.bf16.mxu0 %v1866
        %2101 = vmatmul.mubr.bf16.gmra.mrb[0].mxu0 %v1865
        %v2102 = vpop.f32.mrb[0].mxu0
        %v2103 = vadd.f32 %v1906, %v2102
        %v2104 = vpop.f32.mrb[0].mxu0
        %v2105 = vpop.f32.mrb[0].mxu0
        %v2106 = vadd.f32 %v1906, %v2105
        %v2107 = vpop.f32.mrb[0].mxu0
        %2108 = vmatprep.mubr.bf16.mxu0 %v1868
        %2109 = vmatmul.mubr.bf16.gmra.mrb[0].mxu0 %v1867
        %v2110 = vpop.f32.mrb[0].mxu0
        %v2111 = vadd.f32 %v1906, %v2110
        %v2112 = vpop.f32.mrb[0].mxu0
        %v2113 = vpop.f32.mrb[0].mxu0
        %v2114 = vpop.f32.mrb[0].mxu0
        %2115 = vdwg.mxu0
        %v2116 = vmul.f32 %v2039, 0.1
        %v2117 = vmul.f32 %v2042, 0.1
        %v2118 = vmul.f32 %v2047, 0.1
        %v2119 = vmul.f32 %v2050, 0.1
        %v2120 = vmul.f32 %v2055, 0.1
        %v2121 = vmul.f32 %v2058, 0.1
        %v2122 = vmul.f32 %v2063, 0.1
        %v2123 = vmul.f32 %v2066, 0.1
        %v2124 = vmul.f32 %v2071, 0.1
        %v2125 = vmul.f32 %v2074, 0.1
        %v2126 = vmul.f32 %v2079, 0.1
        %v2127 = vmul.f32 %v2082, 0.1
        %v2128 = vmul.f32 %v2087, 0.1
        %v2129 = vmul.f32 %v2090, 0.1
        %v2130 = vmul.f32 %v2095, 0.1
        %v2131 = vmul.f32 %v2098, 0.1
        %v2132 = vmul.f32 %v2103, 0.1
        %v2133 = vmul.f32 %v2106, 0.1
        %v2134 = vmul.f32 %v2111, 0.1
        %v2135 = vmax.f32 %v2039, %v2116
        %v2136 = vmax.f32 %v2042, %v2117
        %v2137 = vmax.f32 %v2047, %v2118
        %v2138 = vmax.f32 %v2050, %v2119
        %v2139 = vmax.f32 %v2055, %v2120
        %v2140 = vmax.f32 %v2058, %v2121
        %v2141 = vmax.f32 %v2063, %v2122
        %v2142 = vmax.f32 %v2066, %v2123
        %v2143 = vmax.f32 %v2071, %v2124
        %v2144 = vmax.f32 %v2074, %v2125
        %v2145 = vmax.f32 %v2079, %v2126
        %v2146 = vmax.f32 %v2082, %v2127
        %v2147 = vmax.f32 %v2087, %v2128
        %v2148 = vmax.f32 %v2090, %v2129
        %v2149 = vmax.f32 %v2095, %v2130
        %v2150 = vmax.f32 %v2098, %v2131
        %v2151 = vmax.f32 %v2103, %v2132
        %v2152 = vmax.f32 %v2106, %v2133
        %v2153 = vmax.f32 %v2111, %v2134
        %v2154 = vpack.c.bf16 %v2136, %v2135
        %v2155 = vpack.c.bf16 %v2138, %v2137
        %v2156 = vpack.c.bf16 %v2140, %v2139
        %v2157 = vpack.c.bf16 %v2142, %v2141
        %v2158 = vpack.c.bf16 %v2144, %v2143
        %v2159 = vpack.c.bf16 %v2146, %v2145
        %v2160 = vpack.c.bf16 %v2148, %v2147
        %v2161 = vpack.c.bf16 %v2150, %v2149
        %v2162 = vpack.c.bf16 %v2152, %v2151
        %v2163 = vpack.c.bf16 %v2153, %v2153
        %v2164 = vld [vmem:[#allocation6] sm:$0xf]
        %v2165 = vld [vmem:[#allocation6 + $0x4] sm:$0xf]
        %v2166 = vld [vmem:[#allocation6 + $0x8] sm:$0xf]
        %v2167 = vld [vmem:[#allocation6 + $0xc] sm:$0xf]
        %v2168 = vld [vmem:[#allocation6 + $0x10] sm:$0xf]
        %v2169 = vld [vmem:[#allocation6 + $0x14] sm:$0xf]
        %v2170 = vld [vmem:[#allocation6 + $0x18] sm:$0xf]
        %v2171 = vld [vmem:[#allocation6 + $0x1c] sm:$0xf]
        %v2172 = vld [vmem:[#allocation6 + $0x20] sm:$0xf]
        %v2173 = vld [vmem:[#allocation6 + $0x24] sm:$0xf]
        %v2174 = vld [vmem:[#allocation6 + $0x28] sm:$0xf]
        %v2175 = vld [vmem:[#allocation6 + $0x2c] sm:$0xf]
        %v2176 = vld [vmem:[#allocation6 + $0x30] sm:$0xf]
        %v2177 = vld [vmem:[#allocation6 + $0x34] sm:$0xf]
        %v2178 = vld [vmem:[#allocation6 + $0x38] sm:$0xf]
        %v2179 = vld [vmem:[#allocation6 + $0x3c] sm:$0xf]
        %v2180 = vld [vmem:[%s8] sm:$0x1]
        %v2182 = vlaneseq
        %v2183 = vshrl.u32 %v2182, 7
        %v2184 = vsub.s32 0, %v2183
        %v2185 = vrot.slane %v2180, %v2184
        %v2203 = vunpack.c.l.b16 %v2164
        %v2204 = vunpack.c.l.b16 %v2165
        %v2205 = vunpack.c.l.b16 %v2166
        %v2206 = vunpack.c.l.b16 %v2167
        %v2207 = vunpack.c.l.b16 %v2168
        %v2208 = vunpack.c.l.b16 %v2169
        %v2209 = vunpack.c.l.b16 %v2170
        %v2210 = vunpack.c.l.b16 %v2171
        %v2211 = vunpack.c.l.b16 %v2172
        %v2212 = vunpack.c.l.b16 %v2173
        %v2213 = vunpack.c.l.b16 %v2174
        %v2214 = vunpack.c.l.b16 %v2175
        %v2215 = vunpack.c.l.b16 %v2176
        %v2216 = vunpack.c.l.b16 %v2177
        %v2217 = vunpack.c.l.b16 %v2178
        %v2218 = vunpack.c.l.b16 %v2179
        %v2219 = vpack.c.b16 %v2204, %v2203
        %v2220 = vpack.c.b16 %v2206, %v2205
        %v2221 = vpack.c.b16 %v2208, %v2207
        %v2222 = vpack.c.b16 %v2210, %v2209
        %v2223 = vpack.c.b16 %v2212, %v2211
        %v2224 = vpack.c.b16 %v2214, %v2213
        %v2225 = vpack.c.b16 %v2216, %v2215
        %v2226 = vpack.c.b16 %v2218, %v2217
        %2235 = vmatprep.subr.bf16.mxu0 0
        %2236 = vmatpush1.bf16.msra.mxu0 %v2219
        %2237 = vmatprep.subr.bf16.mxu0 0
        %2238 = vmatpush1.bf16.msra.mxu0 %v2220
        %2239 = vmatprep.subr.bf16.mxu0 0
        %2240 = vmatpush1.bf16.msra.mxu0 %v2221
        %2241 = vmatprep.subr.bf16.mxu0 0
        %2242 = vmatpush1.bf16.msra.mxu0 %v2222
        %2243 = vmatprep.subr.bf16.mxu0 0
        %2244 = vmatpush1.bf16.msra.mxu0 %v2223
        %2245 = vmatprep.subr.bf16.mxu0 0
        %2246 = vmatpush1.bf16.msra.mxu0 %v2224
        %2247 = vmatprep.subr.bf16.mxu0 0
        %2248 = vmatpush1.bf16.msra.mxu0 %v2225
        %2249 = vmatprep.subr.bf16.mxu0 0
        %2250 = vmatpush1.bf16.msra.mxu0 %v2226
        %2251 = vmatprep.subr.bf16.mxu0 0
        %2252 = vmatpush1.bf16.msra.mxu0 0
        %2253 = vmatprep.subr.bf16.mxu0 0
        %2254 = vmatpush1.bf16.msra.mxu0 0
        %2255 = vmatprep.subr.bf16.mxu0 0
        %2256 = vmatpush1.bf16.msra.mxu0 0
        %2257 = vmatprep.subr.bf16.mxu0 0
        %2258 = vmatpush1.bf16.msra.mxu0 0
        %2259 = vmatprep.subr.bf16.mxu0 0
        %2260 = vmatpush1.bf16.msra.mxu0 0
        %2261 = vmatprep.subr.bf16.mxu0 0
        %2262 = vmatpush1.bf16.msra.mxu0 0
        %2263 = vmatprep.subr.bf16.mxu0 0
        %2264 = vmatpush1.bf16.msra.mxu0 0
        %2265 = vmatprep.subr.bf16.mxu0 0
        %2266 = vmatpush1.bf16.msra.mxu0 0
        %2267 = vmatprep.mubr.bf16.mxu0 0
        %2268 = vmatmul.mubr.bf16.gmra.mrb[0].mxu0 %v2154
        %v2269 = vpop.f32.mrb[0].mxu0
        %v2270 = vadd.f32 %v2185, %v2269
        %v2271 = vpop.f32.mrb[0].mxu0
        %v2272 = vpop.f32.mrb[0].mxu0
        %v2273 = vadd.f32 %v2185, %v2272
        %v2274 = vpop.f32.mrb[0].mxu0
        %2275 = vmatprep.mubr.bf16.mxu0 0
        %2276 = vmatmul.mubr.bf16.gmra.mrb[0].mxu0 %v2155
        %v2277 = vpop.f32.mrb[0].mxu0
        %v2278 = vadd.f32 %v2185, %v2277
        %v2279 = vpop.f32.mrb[0].mxu0
        %v2280 = vpop.f32.mrb[0].mxu0
        %v2281 = vadd.f32 %v2185, %v2280
        %v2282 = vpop.f32.mrb[0].mxu0
        %2283 = vmatprep.mubr.bf16.mxu0 0
        %2284 = vmatmul.mubr.bf16.gmra.mrb[0].mxu0 %v2156
        %v2285 = vpop.f32.mrb[0].mxu0
        %v2286 = vadd.f32 %v2185, %v2285
        %v2287 = vpop.f32.mrb[0].mxu0
        %v2288 = vpop.f32.mrb[0].mxu0
        %v2289 = vadd.f32 %v2185, %v2288
        %v2290 = vpop.f32.mrb[0].mxu0
        %2291 = vmatprep.mubr.bf16.mxu0 0
        %2292 = vmatmul.mubr.bf16.gmra.mrb[0].mxu0 %v2157
        %v2293 = vpop.f32.mrb[0].mxu0
        %v2294 = vadd.f32 %v2185, %v2293
        %v2295 = vpop.f32.mrb[0].mxu0
        %v2296 = vpop.f32.mrb[0].mxu0
        %v2297 = vadd.f32 %v2185, %v2296
        %v2298 = vpop.f32.mrb[0].mxu0
        %2299 = vmatprep.mubr.bf16.mxu0 0
        %2300 = vmatmul.mubr.bf16.gmra.mrb[0].mxu0 %v2158
        %v2301 = vpop.f32.mrb[0].mxu0
        %v2302 = vadd.f32 %v2185, %v2301
        %v2303 = vpop.f32.mrb[0].mxu0
        %v2304 = vpop.f32.mrb[0].mxu0
        %v2305 = vadd.f32 %v2185, %v2304
        %v2306 = vpop.f32.mrb[0].mxu0
        %2307 = vmatprep.mubr.bf16.mxu0 0
        %2308 = vmatmul.mubr.bf16.gmra.mrb[0].mxu0 %v2159
        %v2309 = vpop.f32.mrb[0].mxu0
        %v2310 = vadd.f32 %v2185, %v2309
        %v2311 = vpop.f32.mrb[0].mxu0
        %v2312 = vpop.f32.mrb[0].mxu0
        %v2313 = vadd.f32 %v2185, %v2312
        %v2314 = vpop.f32.mrb[0].mxu0
        %2315 = vmatprep.mubr.bf16.mxu0 0
        %2316 = vmatmul.mubr.bf16.gmra.mrb[0].mxu0 %v2160
        %v2317 = vpop.f32.mrb[0].mxu0
        %v2318 = vadd.f32 %v2185, %v2317
        %v2319 = vpop.f32.mrb[0].mxu0
        %v2320 = vpop.f32.mrb[0].mxu0
        %v2321 = vadd.f32 %v2185, %v2320
        %v2322 = vpop.f32.mrb[0].mxu0
        %2323 = vmatprep.mubr.bf16.mxu0 0
        %2324 = vmatmul.mubr.bf16.gmra.mrb[0].mxu0 %v2161
        %v2325 = vpop.f32.mrb[0].mxu0
        %v2326 = vadd.f32 %v2185, %v2325
        %v2327 = vpop.f32.mrb[0].mxu0
        %v2328 = vpop.f32.mrb[0].mxu0
        %v2329 = vadd.f32 %v2185, %v2328
        %v2330 = vpop.f32.mrb[0].mxu0
        %2331 = vmatprep.mubr.bf16.mxu0 0
        %2332 = vmatmul.mubr.bf16.gmra.mrb[0].mxu0 %v2162
        %v2333 = vpop.f32.mrb[0].mxu0
        %v2334 = vadd.f32 %v2185, %v2333
        %v2335 = vpop.f32.mrb[0].mxu0
        %v2336 = vpop.f32.mrb[0].mxu0
        %v2337 = vadd.f32 %v2185, %v2336
        %v2338 = vpop.f32.mrb[0].mxu0
        %2339 = vmatprep.mubr.bf16.mxu0 0
        %2340 = vmatmul.mubr.bf16.gmra.mrb[0].mxu0 %v2163
        %v2341 = vpop.f32.mrb[0].mxu0
        %v2342 = vadd.f32 %v2185, %v2341
        %v2343 = vpop.f32.mrb[0].mxu0
        %v2344 = vpop.f32.mrb[0].mxu0
        %v2345 = vpop.f32.mrb[0].mxu0
        %2346 = vdwg.mxu0
        %v2347 = vmul.f32 %v2270, 0.1
        %v2348 = vmul.f32 %v2273, 0.1
        %v2349 = vmul.f32 %v2278, 0.1
        %v2350 = vmul.f32 %v2281, 0.1
        %v2351 = vmul.f32 %v2286, 0.1
        %v2352 = vmul.f32 %v2289, 0.1
        %v2353 = vmul.f32 %v2294, 0.1
        %v2354 = vmul.f32 %v2297, 0.1
        %v2355 = vmul.f32 %v2302, 0.1
        %v2356 = vmul.f32 %v2305, 0.1
        %v2357 = vmul.f32 %v2310, 0.1
        %v2358 = vmul.f32 %v2313, 0.1
        %v2359 = vmul.f32 %v2318, 0.1
        %v2360 = vmul.f32 %v2321, 0.1
        %v2361 = vmul.f32 %v2326, 0.1
        %v2362 = vmul.f32 %v2329, 0.1
        %v2363 = vmul.f32 %v2334, 0.1
        %v2364 = vmul.f32 %v2337, 0.1
        %v2365 = vmul.f32 %v2342, 0.1
        %v2366 = vmax.f32 %v2270, %v2347
        %v2367 = vmax.f32 %v2273, %v2348
        %v2368 = vmax.f32 %v2278, %v2349
        %v2369 = vmax.f32 %v2281, %v2350
        %v2370 = vmax.f32 %v2286, %v2351
        %v2371 = vmax.f32 %v2289, %v2352
        %v2372 = vmax.f32 %v2294, %v2353
        %v2373 = vmax.f32 %v2297, %v2354
        %v2374 = vmax.f32 %v2302, %v2355
        %v2375 = vmax.f32 %v2305, %v2356
        %v2376 = vmax.f32 %v2310, %v2357
        %v2377 = vmax.f32 %v2313, %v2358
        %v2378 = vmax.f32 %v2318, %v2359
        %v2379 = vmax.f32 %v2321, %v2360
        %v2380 = vmax.f32 %v2326, %v2361
        %v2381 = vmax.f32 %v2329, %v2362
        %v2382 = vmax.f32 %v2334, %v2363
        %v2383 = vmax.f32 %v2337, %v2364
        %v2384 = vmax.f32 %v2342, %v2365
        %v2385 = vpack.c.bf16 %v2367, %v2366
        %v2386 = vpack.c.bf16 %v2369, %v2368
        %v2387 = vpack.c.bf16 %v2371, %v2370
        %v2388 = vpack.c.bf16 %v2373, %v2372
        %v2389 = vpack.c.bf16 %v2375, %v2374
        %v2390 = vpack.c.bf16 %v2377, %v2376
        %v2391 = vpack.c.bf16 %v2379, %v2378
        %v2392 = vpack.c.bf16 %v2381, %v2380
        %v2393 = vpack.c.bf16 %v2383, %v2382
        %v2394 = vpack.c.bf16 %v2384, %v2384
        %v2395 = vld [vmem:[#allocation7] sm:$0xf]
        %v2396 = vld [vmem:[#allocation7 + $0x4] sm:$0xf]
        %v2397 = vld [vmem:[#allocation7 + $0x8] sm:$0xf]
        %v2398 = vld [vmem:[#allocation7 + $0xc] sm:$0xf]
        %v2399 = vld [vmem:[#allocation7 + $0x10] sm:$0xf]
        %v2400 = vld [vmem:[#allocation7 + $0x14] sm:$0xf]
        %v2401 = vld [vmem:[#allocation7 + $0x18] sm:$0xf]
        %v2402 = vld [vmem:[#allocation7 + $0x1c] sm:$0xf]
        %v2403 = vld [vmem:[#allocation7 + $0x20] sm:$0xf]
        %v2404 = vld [vmem:[#allocation7 + $0x24] sm:$0xf]
        %v2405 = vld [vmem:[#allocation7 + $0x28] sm:$0xf]
        %v2406 = vld [vmem:[#allocation7 + $0x2c] sm:$0xf]
        %v2407 = vld [vmem:[#allocation7 + $0x30] sm:$0xf]
        %v2408 = vld [vmem:[#allocation7 + $0x34] sm:$0xf]
        %v2409 = vld [vmem:[#allocation7 + $0x38] sm:$0xf]
        %v2410 = vld [vmem:[#allocation7 + $0x3c] sm:$0xf]
        %v2411 = vld [vmem:[%s10] sm:$0x1]
        %v2413 = vlaneseq
        %v2414 = vshrl.u32 %v2413, 7
        %v2415 = vsub.s32 0, %v2414
        %v2416 = vrot.slane %v2411, %v2415
        %v2434 = vunpack.c.l.b16 %v2395
        %v2435 = vunpack.c.l.b16 %v2396
        %v2436 = vunpack.c.l.b16 %v2397
        %v2437 = vunpack.c.l.b16 %v2398
        %v2438 = vunpack.c.l.b16 %v2399
        %v2439 = vunpack.c.l.b16 %v2400
        %v2440 = vunpack.c.l.b16 %v2401
        %v2441 = vunpack.c.l.b16 %v2402
        %v2442 = vunpack.c.l.b16 %v2403
        %v2443 = vunpack.c.l.b16 %v2404
        %v2444 = vunpack.c.l.b16 %v2405
        %v2445 = vunpack.c.l.b16 %v2406
        %v2446 = vunpack.c.l.b16 %v2407
        %v2447 = vunpack.c.l.b16 %v2408
        %v2448 = vunpack.c.l.b16 %v2409
        %v2449 = vunpack.c.l.b16 %v2410
        %v2450 = vpack.c.b16 %v2435, %v2434
        %v2451 = vpack.c.b16 %v2437, %v2436
        %v2452 = vpack.c.b16 %v2439, %v2438
        %v2453 = vpack.c.b16 %v2441, %v2440
        %v2454 = vpack.c.b16 %v2443, %v2442
        %v2455 = vpack.c.b16 %v2445, %v2444
        %v2456 = vpack.c.b16 %v2447, %v2446
        %v2457 = vpack.c.b16 %v2449, %v2448
        %2466 = vmatprep.subr.bf16.mxu0 0
        %2467 = vmatpush1.bf16.msra.mxu0 %v2450
        %2468 = vmatprep.subr.bf16.mxu0 0
        %2469 = vmatpush1.bf16.msra.mxu0 %v2451
        %2470 = vmatprep.subr.bf16.mxu0 0
        %2471 = vmatpush1.bf16.msra.mxu0 %v2452
        %2472 = vmatprep.subr.bf16.mxu0 0
        %2473 = vmatpush1.bf16.msra.mxu0 %v2453
        %2474 = vmatprep.subr.bf16.mxu0 0
        %2475 = vmatpush1.bf16.msra.mxu0 %v2454
        %2476 = vmatprep.subr.bf16.mxu0 0
        %2477 = vmatpush1.bf16.msra.mxu0 %v2455
        %2478 = vmatprep.subr.bf16.mxu0 0
        %2479 = vmatpush1.bf16.msra.mxu0 %v2456
        %2480 = vmatprep.subr.bf16.mxu0 0
        %2481 = vmatpush1.bf16.msra.mxu0 %v2457
        %2482 = vmatprep.subr.bf16.mxu0 0
        %2483 = vmatpush1.bf16.msra.mxu0 0
        %2484 = vmatprep.subr.bf16.mxu0 0
        %2485 = vmatpush1.bf16.msra.mxu0 0
        %2486 = vmatprep.subr.bf16.mxu0 0
        %2487 = vmatpush1.bf16.msra.mxu0 0
        %2488 = vmatprep.subr.bf16.mxu0 0
        %2489 = vmatpush1.bf16.msra.mxu0 0
        %2490 = vmatprep.subr.bf16.mxu0 0
        %2491 = vmatpush1.bf16.msra.mxu0 0
        %2492 = vmatprep.subr.bf16.mxu0 0
        %2493 = vmatpush1.bf16.msra.mxu0 0
        %2494 = vmatprep.subr.bf16.mxu0 0
        %2495 = vmatpush1.bf16.msra.mxu0 0
        %2496 = vmatprep.subr.bf16.mxu0 0
        %2497 = vmatpush1.bf16.msra.mxu0 0
        %2498 = vmatprep.mubr.bf16.mxu0 0
        %2499 = vmatmul.mubr.bf16.gmra.mrb[0].mxu0 %v2385
        %v2500 = vpop.f32.mrb[0].mxu0
        %v2501 = vadd.f32 %v2416, %v2500
        %v2502 = vpop.f32.mrb[0].mxu0
        %v2503 = vpop.f32.mrb[0].mxu0
        %v2504 = vadd.f32 %v2416, %v2503
        %v2505 = vpop.f32.mrb[0].mxu0
        %2506 = vmatprep.mubr.bf16.mxu0 0
        %2507 = vmatmul.mubr.bf16.gmra.mrb[0].mxu0 %v2386
        %v2508 = vpop.f32.mrb[0].mxu0
        %v2509 = vadd.f32 %v2416, %v2508
        %v2510 = vpop.f32.mrb[0].mxu0
        %v2511 = vpop.f32.mrb[0].mxu0
        %v2512 = vadd.f32 %v2416, %v2511
        %v2513 = vpop.f32.mrb[0].mxu0
        %2514 = vmatprep.mubr.bf16.mxu0 0
        %2515 = vmatmul.mubr.bf16.gmra.mrb[0].mxu0 %v2387
        %v2516 = vpop.f32.mrb[0].mxu0
        %v2517 = vadd.f32 %v2416, %v2516
        %v2518 = vpop.f32.mrb[0].mxu0
        %v2519 = vpop.f32.mrb[0].mxu0
        %v2520 = vadd.f32 %v2416, %v2519
        %v2521 = vpop.f32.mrb[0].mxu0
        %2522 = vmatprep.mubr.bf16.mxu0 0
        %2523 = vmatmul.mubr.bf16.gmra.mrb[0].mxu0 %v2388
        %v2524 = vpop.f32.mrb[0].mxu0
        %v2525 = vadd.f32 %v2416, %v2524
        %v2526 = vpop.f32.mrb[0].mxu0
        %v2527 = vpop.f32.mrb[0].mxu0
        %v2528 = vadd.f32 %v2416, %v2527
        %v2529 = vpop.f32.mrb[0].mxu0
        %2530 = vmatprep.mubr.bf16.mxu0 0
        %2531 = vmatmul.mubr.bf16.gmra.mrb[0].mxu0 %v2389
        %v2532 = vpop.f32.mrb[0].mxu0
        %v2533 = vadd.f32 %v2416, %v2532
        %v2534 = vpop.f32.mrb[0].mxu0
        %v2535 = vpop.f32.mrb[0].mxu0
        %v2536 = vadd.f32 %v2416, %v2535
        %v2537 = vpop.f32.mrb[0].mxu0
        %2538 = vmatprep.mubr.bf16.mxu0 0
        %2539 = vmatmul.mubr.bf16.gmra.mrb[0].mxu0 %v2390
        %v2540 = vpop.f32.mrb[0].mxu0
        %v2541 = vadd.f32 %v2416, %v2540
        %v2542 = vpop.f32.mrb[0].mxu0
        %v2543 = vpop.f32.mrb[0].mxu0
        %v2544 = vadd.f32 %v2416, %v2543
        %v2545 = vpop.f32.mrb[0].mxu0
        %2546 = vmatprep.mubr.bf16.mxu0 0
        %2547 = vmatmul.mubr.bf16.gmra.mrb[0].mxu0 %v2391
        %v2548 = vpop.f32.mrb[0].mxu0
        %v2549 = vadd.f32 %v2416, %v2548
        %v2550 = vpop.f32.mrb[0].mxu0
        %v2551 = vpop.f32.mrb[0].mxu0
        %v2552 = vadd.f32 %v2416, %v2551
        %v2553 = vpop.f32.mrb[0].mxu0
        %2554 = vmatprep.mubr.bf16.mxu0 0
        %2555 = vmatmul.mubr.bf16.gmra.mrb[0].mxu0 %v2392
        %v2556 = vpop.f32.mrb[0].mxu0
        %v2557 = vadd.f32 %v2416, %v2556
        %v2558 = vpop.f32.mrb[0].mxu0
        %v2559 = vpop.f32.mrb[0].mxu0
        %v2560 = vadd.f32 %v2416, %v2559
        %v2561 = vpop.f32.mrb[0].mxu0
        %2562 = vmatprep.mubr.bf16.mxu0 0
        %2563 = vmatmul.mubr.bf16.gmra.mrb[0].mxu0 %v2393
        %v2564 = vpop.f32.mrb[0].mxu0
        %v2565 = vadd.f32 %v2416, %v2564
        %v2566 = vpop.f32.mrb[0].mxu0
        %v2567 = vpop.f32.mrb[0].mxu0
        %v2568 = vadd.f32 %v2416, %v2567
        %v2569 = vpop.f32.mrb[0].mxu0
        %2570 = vmatprep.mubr.bf16.mxu0 0
        %2571 = vmatmul.mubr.bf16.gmra.mrb[0].mxu0 %v2394
        %v2572 = vpop.f32.mrb[0].mxu0
        %v2573 = vadd.f32 %v2416, %v2572
        %v2574 = vpop.f32.mrb[0].mxu0
        %v2575 = vpop.f32.mrb[0].mxu0
        %v2576 = vpop.f32.mrb[0].mxu0
        %2577 = vdwg.mxu0
        %v2578 = vmul.f32 %v2501, 0.1
        %v2579 = vmul.f32 %v2504, 0.1
        %v2580 = vmul.f32 %v2509, 0.1
        %v2581 = vmul.f32 %v2512, 0.1
        %v2582 = vmul.f32 %v2517, 0.1
        %v2583 = vmul.f32 %v2520, 0.1
        %v2584 = vmul.f32 %v2525, 0.1
        %v2585 = vmul.f32 %v2528, 0.1
        %v2586 = vmul.f32 %v2533, 0.1
        %v2587 = vmul.f32 %v2536, 0.1
        %v2588 = vmul.f32 %v2541, 0.1
        %v2589 = vmul.f32 %v2544, 0.1
        %v2590 = vmul.f32 %v2549, 0.1
        %v2591 = vmul.f32 %v2552, 0.1
        %v2592 = vmul.f32 %v2557, 0.1
        %v2593 = vmul.f32 %v2560, 0.1
        %v2594 = vmul.f32 %v2565, 0.1
        %v2595 = vmul.f32 %v2568, 0.1
        %v2596 = vmul.f32 %v2573, 0.1
        %v2597 = vmax.f32 %v2501, %v2578
        %v2598 = vmax.f32 %v2504, %v2579
        %v2599 = vmax.f32 %v2509, %v2580
        %v2600 = vmax.f32 %v2512, %v2581
        %v2601 = vmax.f32 %v2517, %v2582
        %v2602 = vmax.f32 %v2520, %v2583
        %v2603 = vmax.f32 %v2525, %v2584
        %v2604 = vmax.f32 %v2528, %v2585
        %v2605 = vmax.f32 %v2533, %v2586
        %v2606 = vmax.f32 %v2536, %v2587
        %v2607 = vmax.f32 %v2541, %v2588
        %v2608 = vmax.f32 %v2544, %v2589
        %v2609 = vmax.f32 %v2549, %v2590
        %v2610 = vmax.f32 %v2552, %v2591
        %v2611 = vmax.f32 %v2557, %v2592
        %v2612 = vmax.f32 %v2560, %v2593
        %v2613 = vmax.f32 %v2565, %v2594
        %v2614 = vmax.f32 %v2568, %v2595
        %v2615 = vmax.f32 %v2573, %v2596
        %v2616 = vpack.c.bf16 %v2598, %v2597
        %v2617 = vpack.c.bf16 %v2600, %v2599
        %v2618 = vpack.c.bf16 %v2602, %v2601
        %v2619 = vpack.c.bf16 %v2604, %v2603
        %v2620 = vpack.c.bf16 %v2606, %v2605
        %v2621 = vpack.c.bf16 %v2608, %v2607
        %v2622 = vpack.c.bf16 %v2610, %v2609
        %v2623 = vpack.c.bf16 %v2612, %v2611
        %v2624 = vpack.c.bf16 %v2614, %v2613
        %v2625 = vpack.c.bf16 %v2615, %v2615
        %v2626 = vld [vmem:[#allocation9] sm:$0xf]
        %v2627 = vld [vmem:[#allocation9 + $0x4] sm:$0xf]
        %v2628 = vld [vmem:[#allocation9 + $0x8] sm:$0xf]
        %v2629 = vld [vmem:[#allocation9 + $0xc] sm:$0xf]
        %v2630 = vld [vmem:[#allocation9 + $0x10] sm:$0xf]
        %v2631 = vld [vmem:[#allocation9 + $0x14] sm:$0xf]
        %v2632 = vld [vmem:[#allocation9 + $0x18] sm:$0xf]
        %v2633 = vld [vmem:[#allocation9 + $0x1c] sm:$0xf]
        %v2634 = vld [vmem:[#allocation9 + $0x20] sm:$0xf]
        %v2635 = vld [vmem:[#allocation9 + $0x24] sm:$0xf]
        %v2636 = vld [vmem:[#allocation9 + $0x28] sm:$0xf]
        %v2637 = vld [vmem:[#allocation9 + $0x2c] sm:$0xf]
        %v2638 = vld [vmem:[#allocation9 + $0x30] sm:$0xf]
        %v2639 = vld [vmem:[#allocation9 + $0x34] sm:$0xf]
        %v2640 = vld [vmem:[#allocation9 + $0x38] sm:$0xf]
        %v2641 = vld [vmem:[#allocation9 + $0x3c] sm:$0xf]
        %v2642 = vld [vmem:[%s12] sm:$0x1]
        %v2644 = vlaneseq
        %v2645 = vshrl.u32 %v2644, 7
        %v2646 = vsub.s32 0, %v2645
        %v2647 = vrot.slane %v2642, %v2646
        %v2665 = vunpack.c.l.b16 %v2626
        %v2666 = vunpack.c.l.b16 %v2627
        %v2667 = vunpack.c.l.b16 %v2628
        %v2668 = vunpack.c.l.b16 %v2629
        %v2669 = vunpack.c.l.b16 %v2630
        %v2670 = vunpack.c.l.b16 %v2631
        %v2671 = vunpack.c.l.b16 %v2632
        %v2672 = vunpack.c.l.b16 %v2633
        %v2673 = vunpack.c.l.b16 %v2634
        %v2674 = vunpack.c.l.b16 %v2635
        %v2675 = vunpack.c.l.b16 %v2636
        %v2676 = vunpack.c.l.b16 %v2637
        %v2677 = vunpack.c.l.b16 %v2638
        %v2678 = vunpack.c.l.b16 %v2639
        %v2679 = vunpack.c.l.b16 %v2640
        %v2680 = vunpack.c.l.b16 %v2641
        %v2681 = vpack.c.b16 %v2666, %v2665
        %v2682 = vpack.c.b16 %v2668, %v2667
        %v2683 = vpack.c.b16 %v2670, %v2669
        %v2684 = vpack.c.b16 %v2672, %v2671
        %v2685 = vpack.c.b16 %v2674, %v2673
        %v2686 = vpack.c.b16 %v2676, %v2675
        %v2687 = vpack.c.b16 %v2678, %v2677
        %v2688 = vpack.c.b16 %v2680, %v2679
        %2697 = vmatprep.subr.bf16.mxu0 0
        %2698 = vmatpush1.bf16.msra.mxu0 %v2681
        %2699 = vmatprep.subr.bf16.mxu0 0
        %2700 = vmatpush1.bf16.msra.mxu0 %v2682
        %2701 = vmatprep.subr.bf16.mxu0 0
        %2702 = vmatpush1.bf16.msra.mxu0 %v2683
        %2703 = vmatprep.subr.bf16.mxu0 0
        %2704 = vmatpush1.bf16.msra.mxu0 %v2684
        %2705 = vmatprep.subr.bf16.mxu0 0
        %2706 = vmatpush1.bf16.msra.mxu0 %v2685
        %2707 = vmatprep.subr.bf16.mxu0 0
        %2708 = vmatpush1.bf16.msra.mxu0 %v2686
        %2709 = vmatprep.subr.bf16.mxu0 0
        %2710 = vmatpush1.bf16.msra.mxu0 %v2687
        %2711 = vmatprep.subr.bf16.mxu0 0
        %2712 = vmatpush1.bf16.msra.mxu0 %v2688
        %2713 = vmatprep.subr.bf16.mxu0 0
        %2714 = vmatpush1.bf16.msra.mxu0 0
        %2715 = vmatprep.subr.bf16.mxu0 0
        %2716 = vmatpush1.bf16.msra.mxu0 0
        %2717 = vmatprep.subr.bf16.mxu0 0
        %2718 = vmatpush1.bf16.msra.mxu0 0
        %2719 = vmatprep.subr.bf16.mxu0 0
        %2720 = vmatpush1.bf16.msra.mxu0 0
        %2721 = vmatprep.subr.bf16.mxu0 0
        %2722 = vmatpush1.bf16.msra.mxu0 0
        %2723 = vmatprep.subr.bf16.mxu0 0
        %2724 = vmatpush1.bf16.msra.mxu0 0
        %2725 = vmatprep.subr.bf16.mxu0 0
        %2726 = vmatpush1.bf16.msra.mxu0 0
        %2727 = vmatprep.subr.bf16.mxu0 0
        %2728 = vmatpush1.bf16.msra.mxu0 0
        %2729 = vmatprep.mubr.bf16.mxu0 0
        %2730 = vmatmul.mubr.bf16.gmra.mrb[0].mxu0 %v2616
        %v2731 = vpop.f32.mrb[0].mxu0
        %v2732 = vadd.f32 %v2647, %v2731
        %v2733 = vpop.f32.mrb[0].mxu0
        %v2734 = vpop.f32.mrb[0].mxu0
        %v2735 = vadd.f32 %v2647, %v2734
        %v2736 = vpop.f32.mrb[0].mxu0
        %2737 = vmatprep.mubr.bf16.mxu0 0
        %2738 = vmatmul.mubr.bf16.gmra.mrb[0].mxu0 %v2617
        %v2739 = vpop.f32.mrb[0].mxu0
        %v2740 = vadd.f32 %v2647, %v2739
        %v2741 = vpop.f32.mrb[0].mxu0
        %v2742 = vpop.f32.mrb[0].mxu0
        %v2743 = vadd.f32 %v2647, %v2742
        %v2744 = vpop.f32.mrb[0].mxu0
        %2745 = vmatprep.mubr.bf16.mxu0 0
        %2746 = vmatmul.mubr.bf16.gmra.mrb[0].mxu0 %v2618
        %v2747 = vpop.f32.mrb[0].mxu0
        %v2748 = vadd.f32 %v2647, %v2747
        %v2749 = vpop.f32.mrb[0].mxu0
        %v2750 = vpop.f32.mrb[0].mxu0
        %v2751 = vadd.f32 %v2647, %v2750
        %v2752 = vpop.f32.mrb[0].mxu0
        %2753 = vmatprep.mubr.bf16.mxu0 0
        %2754 = vmatmul.mubr.bf16.gmra.mrb[0].mxu0 %v2619
        %v2755 = vpop.f32.mrb[0].mxu0
        %v2756 = vadd.f32 %v2647, %v2755
        %v2757 = vpop.f32.mrb[0].mxu0
        %v2758 = vpop.f32.mrb[0].mxu0
        %v2759 = vadd.f32 %v2647, %v2758
        %v2760 = vpop.f32.mrb[0].mxu0
        %2761 = vmatprep.mubr.bf16.mxu0 0
        %2762 = vmatmul.mubr.bf16.gmra.mrb[0].mxu0 %v2620
        %v2763 = vpop.f32.mrb[0].mxu0
        %v2764 = vadd.f32 %v2647, %v2763
        %v2765 = vpop.f32.mrb[0].mxu0
        %v2766 = vpop.f32.mrb[0].mxu0
        %v2767 = vadd.f32 %v2647, %v2766
        %v2768 = vpop.f32.mrb[0].mxu0
        %2769 = vmatprep.mubr.bf16.mxu0 0
        %2770 = vmatmul.mubr.bf16.gmra.mrb[0].mxu0 %v2621
        %v2771 = vpop.f32.mrb[0].mxu0
        %v2772 = vadd.f32 %v2647, %v2771
        %v2773 = vpop.f32.mrb[0].mxu0
        %v2774 = vpop.f32.mrb[0].mxu0
        %v2775 = vadd.f32 %v2647, %v2774
        %v2776 = vpop.f32.mrb[0].mxu0
        %2777 = vmatprep.mubr.bf16.mxu0 0
        %2778 = vmatmul.mubr.bf16.gmra.mrb[0].mxu0 %v2622
        %v2779 = vpop.f32.mrb[0].mxu0
        %v2780 = vadd.f32 %v2647, %v2779
        %v2781 = vpop.f32.mrb[0].mxu0
        %v2782 = vpop.f32.mrb[0].mxu0
        %v2783 = vadd.f32 %v2647, %v2782
        %v2784 = vpop.f32.mrb[0].mxu0
        %2785 = vmatprep.mubr.bf16.mxu0 0
        %2786 = vmatmul.mubr.bf16.gmra.mrb[0].mxu0 %v2623
        %v2787 = vpop.f32.mrb[0].mxu0
        %v2788 = vadd.f32 %v2647, %v2787
        %v2789 = vpop.f32.mrb[0].mxu0
        %v2790 = vpop.f32.mrb[0].mxu0
        %v2791 = vadd.f32 %v2647, %v2790
        %v2792 = vpop.f32.mrb[0].mxu0
        %2793 = vmatprep.mubr.bf16.mxu0 0
        %2794 = vmatmul.mubr.bf16.gmra.mrb[0].mxu0 %v2624
        %v2795 = vpop.f32.mrb[0].mxu0
        %v2796 = vadd.f32 %v2647, %v2795
        %v2797 = vpop.f32.mrb[0].mxu0
        %v2798 = vpop.f32.mrb[0].mxu0
        %v2799 = vadd.f32 %v2647, %v2798
        %v2800 = vpop.f32.mrb[0].mxu0
        %2801 = vmatprep.mubr.bf16.mxu0 0
        %2802 = vmatmul.mubr.bf16.gmra.mrb[0].mxu0 %v2625
        %v2803 = vpop.f32.mrb[0].mxu0
        %v2804 = vadd.f32 %v2647, %v2803
        %v2805 = vpop.f32.mrb[0].mxu0
        %v2806 = vpop.f32.mrb[0].mxu0
        %v2807 = vpop.f32.mrb[0].mxu0
        %2808 = vdwg.mxu0
        %2809 = vst [vmem:[%s513] sm:$0xff] %v2732
        %2810 = vst [vmem:[%s513 + $0x8] sm:$0xff] %v2735
        %2811 = vst [vmem:[%s513 + $0x10] sm:$0xff] %v2740
        %2812 = vst [vmem:[%s513 + $0x18] sm:$0xff] %v2743
        %2813 = vst [vmem:[%s513 + $0x20] sm:$0xff] %v2748
        %2814 = vst [vmem:[%s513 + $0x28] sm:$0xff] %v2751
        %2815 = vst [vmem:[%s513 + $0x30] sm:$0xff] %v2756
        %2816 = vst [vmem:[%s513 + $0x38] sm:$0xff] %v2759
        %2817 = vst [vmem:[%s513 + $0x40] sm:$0xff] %v2764
        %2818 = vst [vmem:[%s513 + $0x48] sm:$0xff] %v2767
        %2819 = vst [vmem:[%s513 + $0x50] sm:$0xff] %v2772
        %2820 = vst [vmem:[%s513 + $0x58] sm:$0xff] %v2775
        %2821 = vst [vmem:[%s513 + $0x60] sm:$0xff] %v2780
        %2822 = vst [vmem:[%s513 + $0x68] sm:$0xff] %v2783
        %2823 = vst [vmem:[%s513 + $0x70] sm:$0xff] %v2788
        %2824 = vst [vmem:[%s513 + $0x78] sm:$0xff] %v2791
        %2825 = vst [vmem:[%s513 + $0x80] sm:$0xff] %v2796
        %2826 = vst [vmem:[%s513 + $0x88] sm:$0xff] %v2799
        %2827 = vst [vmem:[%s513 + $0x90] sm:$0xff] %v2804
        %s2828 = smul.u32 19, %s27
        %p2829 = scmp.lt.s32.totalorder %s2828, 37
        %s2830 = scalar_select %p2829, %s2828, 37
        %s2831 = smul.addr %s2830, 8
        %s2832 = scalar_lea.vmem %s13, %s2831
        // Predicated region
        $region93: #{landing_predictor_forward.1} parent=71 // pred_check
          %p2833 = pneg %p323
        $region94: #{landing_predictor_forward.1} parent=71 // pred_check_branch
          %2835 = sbr.rel (%p2833) target = $region96
        $region95: #{landing_predictor_forward.1} parent=71 // pred_region
          %s2836 = smul.u32 19, %s27
        $region96: #{landing_predictor_forward.1} parent=71 // pred_fallthru
          _
      $region72: #{landing_predictor_forward.1} parent=5 // pred_fallthru
        _
      %p2837 = scmp.le.s32.totalorder 2, %s22
      // Predicated region
      $region97: #{landing_predictor_forward.1} parent=5 // pred_check
        %p2838 = pneg %p2837
      $region98: #{landing_predictor_forward.1} parent=5 // pred_check_branch
        %2840 = sbr.rel (%p2838) target = $region100
      $region99: #{landing_predictor_forward.1} parent=5 // pred_region
        %s2841 = ssub.s32 %s22, 2
        // Predicated region
        $region101: #{landing_predictor_forward.1} parent=99 // pred_check
          %p2842 = pneg %p329
        $region102: #{landing_predictor_forward.1} parent=99 // pred_check_branch
          %2844 = sbr.rel (%p2842) target = $region104
        $region103: #{landing_predictor_forward.1} parent=99 // pred_region
          %s2845 = smul.u32 19, %s28
          %p2846 = scmp.lt.s32.totalorder %s2845, 37
          %s2847 = scalar_select %p2846, %s2845, 37
          %s2848 = smul.addr %s2847, 8
          %s2849 = scalar_lea.vmem %s13, %s2848
        $region104: #{landing_predictor_forward.1} parent=99 // pred_fallthru
          _
      $region100: #{landing_predictor_forward.1} parent=5 // pred_fallthru
        _
    $region6: #{landing_predictor_forward.1} parent=1 // loop_footer
      %s26 = sadd.s32 1, %s22
    $region7: #{landing_predictor_forward.1} parent=1 // loop_footer_branch
      %21 = sbr.rel target = $region3
    $region8: #{landing_predictor_forward.1} parent=1 // loop_exit
      _
    %2850 = vsyncpa [#allocation3], 1
    %s2851 = scalar_lea.sflag [#allocation3], 1
    %2852 = vsyncpa %s2851, 1
    %2853 = vsyncpa [#allocation5], 1
    %2854 = vsyncpa [#allocation8], 1

</llo_original>
